<compile_context>
chip_gen: v7x
topology: tpu7x:2x2x1
jax: 0.10.0
libtpu: 0.0.40
codegen_flags: <defaults>
</compile_context>

<pallas_src>
import functools

import jax
import jax.numpy as jnp
from jax.experimental import pallas as pl
from jax.experimental.pallas import tpu as pltpu


NEG_SLOPE = 0.2
BN_EPS = 1e-5
MATMUL_DTYPE = jnp.bfloat16   # MXU-native operand dtype; accumulation stays f32.


def _leaky(h):
    return jnp.where(h >= 0, h, NEG_SLOPE * h)


def _round_up(x, m):
    return (x + m - 1) // m * m


def quadrantnet_kernel(x1_ref, x2_ref,
                       w1_ref, s1_ref, b1_ref,
                       w2_ref, s2_ref, b2_ref,
                       w3_ref, s3_ref, b3_ref,
                       fwa_ref, fwb_ref, fb_ref,
                       out_ref):
    """Fused QuadrantNet forward for one batch tile.

    The two branches share weights, so the x1 and x2 tiles are stacked along
    the sublane (batch) axis and pushed through the conv+bn+leaky chain as a
    single set of MXU matmuls.  fc1 on the concatenated embedding is computed
    as two matmuls on the split halves, accumulated into a lane-dense
    (128-wide, zero-padded) output block.
    """
    tb = x1_ref.shape[0]
    x = jnp.concatenate([x1_ref[...], x2_ref[...]], axis=0)      # (2*tb, 128) bf16

    # Load folded BN scale/shift once (shared by both stacked branches).
    s1, b1 = s1_ref[...], b1_ref[...]
    s2, b2 = s2_ref[...], b2_ref[...]
    s3, b3 = s3_ref[...], b3_ref[...]

    # conv1 (128 -> 64) + bn1 + leaky
    h = jnp.dot(x, w1_ref[...], preferred_element_type=jnp.float32)
    h = _leaky(h * s1 + b1)
    # conv2 (64 -> 128) + bn2 + leaky
    h = jnp.dot(h.astype(w2_ref.dtype), w2_ref[...],
                preferred_element_type=jnp.float32)
    h = _leaky(h * s2 + b2)
    # conv3 (128 -> emb_dims) + bn3 + leaky
    h = jnp.dot(h.astype(w3_ref.dtype), w3_ref[...],
                preferred_element_type=jnp.float32)
    e = _leaky(h * s3 + b3)                                      # (2*tb, emb) f32

    e1 = e[:tb].astype(fwa_ref.dtype)
    e2 = e[tb:].astype(fwb_ref.dtype)
    # fc1(concat([e1, e2], axis=1)) == e1 @ Wa.T + e2 @ Wb.T + b  (lane-padded)
    out_ref[...] = (
        jnp.dot(e1, fwa_ref[...], preferred_element_type=jnp.float32)
        + jnp.dot(e2, fwb_ref[...], preferred_element_type=jnp.float32)
        + fb_ref[...]
    )


def make_params(key, emb_dims=256, output_channels=4):
    """Deterministic synthetic parameters matching QuadrantNet.__init__ shapes."""
    ks = jax.random.split(key, 17)

    def conv_w(k, c_out, c_in):
        # PyTorch Conv1d weight: (C_out, C_in, 1); drop the trailing 1.
        return 0.05 * jax.random.normal(k, (c_out, c_in), jnp.float32)

    def bn(kg, kb, km, kv, c):
        gamma = 1.0 + 0.1 * jax.random.normal(kg, (c,), jnp.float32)
        beta = 0.1 * jax.random.normal(kb, (c,), jnp.float32)
        running_mean = 0.1 * jax.random.normal(km, (c,), jnp.float32)
        running_var = 1.0 + 0.1 * jax.random.uniform(kv, (c,), jnp.float32)
        return gamma, beta, running_mean, running_var

    p = {}
    p["w1"] = conv_w(ks[0], 64, 128)
    p["bn1"] = bn(ks[1], ks[2], ks[3], ks[4], 64)
    p["w2"] = conv_w(ks[5], 128, 64)
    p["bn2"] = bn(ks[6], ks[7], ks[8], ks[9], 128)
    p["w3"] = conv_w(ks[10], emb_dims, 128)
    p["bn3"] = bn(ks[11], ks[12], ks[13], ks[14], emb_dims)
    p["fc_w"] = 0.05 * jax.random.normal(ks[15], (output_channels, 2 * emb_dims),
                                         jnp.float32)
    p["fc_b"] = 0.05 * jax.random.normal(ks[16], (output_channels,), jnp.float32)
    return p


def _fold_bn(bn_params):
    gamma, beta, mean, var = bn_params
    scale = gamma / jnp.sqrt(var + BN_EPS)
    shift = beta - mean * scale
    return scale[None, :].astype(jnp.float32), shift[None, :].astype(jnp.float32)


def quadrantnet_forward(input1, input2, params, *, tile_b=256):
    """input1, input2: (B, 128, 1) float32 (PyTorch NCL). Returns (B, output_channels)."""
    assert input1.shape[2] == 1 and input2.shape[2] == 1, "squeeze(2) requires L == 1"
    B, c_in = input1.shape[0], input1.shape[1]
    emb_dims = params["w3"].shape[0]
    out_ch = params["fc_w"].shape[0]
    out_pad = _round_up(max(out_ch, 128), 128)      # lane-dense (unmasked) stores

    # Batch tiling: tile must be a multiple of 8 sublanes; pad B up to the grid.
    tb = _round_up(min(tile_b, _round_up(B, 8)), 8)
    b_pad = _round_up(B, tb)
    n_tiles = b_pad // tb

    def prep_x(x):
        x = x[:, :, 0].astype(MATMUL_DTYPE)                       # (B, 128)
        return jnp.pad(x, ((0, b_pad - B), (0, 0)))

    x1 = prep_x(input1)
    x2 = prep_x(input2)

    s1, b1 = _fold_bn(params["bn1"])
    s2, b2 = _fold_bn(params["bn2"])
    s3, b3 = _fold_bn(params["bn3"])

    w1t = params["w1"].T.astype(MATMUL_DTYPE)                     # (128, 64)
    w2t = params["w2"].T.astype(MATMUL_DTYPE)                     # (64, 128)
    w3t = params["w3"].T.astype(MATMUL_DTYPE)                     # (128, emb_dims)
    fwa = jnp.pad(params["fc_w"][:, :emb_dims].T,
                  ((0, 0), (0, out_pad - out_ch))).astype(MATMUL_DTYPE)
    fwb = jnp.pad(params["fc_w"][:, emb_dims:].T,
                  ((0, 0), (0, out_pad - out_ch))).astype(MATMUL_DTYPE)
    fb = jnp.pad(params["fc_b"][None, :],
                 ((0, 0), (0, out_pad - out_ch))).astype(jnp.float32)

    x_spec = pl.BlockSpec((tb, c_in), lambda i: (i, 0))

    def resident(arr):
        # Same block every grid step -> stays VMEM-resident (no re-DMA).
        return pl.BlockSpec(arr.shape, lambda i: (0, 0))

    in_specs = [
        x_spec, x_spec,
        resident(w1t), resident(s1), resident(b1),
        resident(w2t), resident(s2), resident(b2),
        resident(w3t), resident(s3), resident(b3),
        resident(fwa), resident(fwb), resident(fb),
    ]

    out = pl.pallas_call(
        quadrantnet_kernel,
        out_shape=jax.ShapeDtypeStruct((b_pad, out_pad), jnp.float32),
        grid=(n_tiles,),
        in_specs=in_specs,
        out_specs=pl.BlockSpec((tb, out_pad), lambda i: (i, 0)),
        compiler_params=pltpu.CompilerParams(
            dimension_semantics=("parallel",)),
    )(x1, x2, w1t, s1, b1, w2t, s2, b2, w3t, s3, b3, fwa, fwb, fb)

    return out[:B, :out_ch]


def quadrantnet_reference(input1, input2, params):
    """Pure-JAX f32 reference (same eval-mode semantics) for verification."""
    s1, b1 = _fold_bn(params["bn1"])
    s2, b2 = _fold_bn(params["bn2"])
    s3, b3 = _fold_bn(params["bn3"])

    def branch(x):
        h = _leaky(x @ params["w1"].T * s1 + b1)
        h = _leaky(h @ params["w2"].T * s2 + b2)
        h = _leaky(h @ params["w3"].T * s3 + b3)
        return h

    e1 = branch(input1[:, :, 0])
    e2 = branch(input2[:, :, 0])
    x = jnp.concatenate([e1, e2], axis=1)
    return x @ params["fc_w"].T + params["fc_b"][None, :]


if __name__ == "__main__":
    key = jax.random.PRNGKey(0)
    k_in1, k_in2, k_p = jax.random.split(key, 3)

    B, C_IN, L = 40, 128, 1       # L must be 1 (forward squeezes dim 2)
    EMB_DIMS, OUT_CH = 256, 4

    input1 = jax.random.normal(k_in1, (B, C_IN, L), jnp.float32)
    input2 = jax.random.normal(k_in2, (B, C_IN, L), jnp.float32)
    params = make_params(k_p, emb_dims=EMB_DIMS, output_channels=OUT_CH)

    # Small tile for the test so the grid actually iterates (B=40 -> 3 tiles of 16,
    # incl. zero-padding).  Production default tile_b=256.
    fwd = jax.jit(functools.partial(quadrantnet_forward, tile_b=16))
    out = jax.block_until_ready(fwd(input1, input2, params))

    ref = quadrantnet_reference(input1, input2, params)
    assert out.shape == (B, OUT_CH)
    # bf16 matmul operands (f32 accumulation) => loose tolerance vs. pure-f32 ref.
    assert jnp.allclose(out, ref, rtol=2e-2, atol=2e-2), "mismatch vs reference"

    print("KERNEL_OK")
</pallas_src>

<mosaic_0001>
module attributes {stable_mosaic.version = 11 : i64} {
  func.func @quadrantnet_kernel(%arg0: i32, %arg1: memref<16x128xbf16, #tpu.memory_space<vmem>>, %arg2: memref<16x128xbf16, #tpu.memory_space<vmem>>, %arg3: memref<128x64xbf16, #tpu.memory_space<vmem>>, %arg4: memref<1x64xf32, #tpu.memory_space<vmem>>, %arg5: memref<1x64xf32, #tpu.memory_space<vmem>>, %arg6: memref<64x128xbf16, #tpu.memory_space<vmem>>, %arg7: memref<1x128xf32, #tpu.memory_space<vmem>>, %arg8: memref<1x128xf32, #tpu.memory_space<vmem>>, %arg9: memref<128x256xbf16, #tpu.memory_space<vmem>>, %arg10: memref<1x256xf32, #tpu.memory_space<vmem>>, %arg11: memref<1x256xf32, #tpu.memory_space<vmem>>, %arg12: memref<256x128xbf16, #tpu.memory_space<vmem>>, %arg13: memref<256x128xbf16, #tpu.memory_space<vmem>>, %arg14: memref<1x128xf32, #tpu.memory_space<vmem>>, %arg15: memref<16x128xf32, #tpu.memory_space<vmem>>) attributes {dimension_semantics = [#tpu.dimension_semantics<parallel>], iteration_bounds = array<i64: 3>, scalar_prefetch = 0 : i64, scratch_operands = 0 : i64, tpu.core_type = #tpu.core_type<tc>, window_params = [{transform_indices = @transform_0, window_bounds = array<i64: 16, 128>}, {transform_indices = @transform_1, window_bounds = array<i64: 16, 128>}, {pipeline_mode = #tpu.pipeline_mode<synchronous>, transform_indices = @transform_2, window_bounds = array<i64: 128, 64>}, {pipeline_mode = #tpu.pipeline_mode<synchronous>, transform_indices = @transform_3, window_bounds = array<i64: 1, 64>}, {pipeline_mode = #tpu.pipeline_mode<synchronous>, transform_indices = @transform_4, window_bounds = array<i64: 1, 64>}, {pipeline_mode = #tpu.pipeline_mode<synchronous>, transform_indices = @transform_5, window_bounds = array<i64: 64, 128>}, {pipeline_mode = #tpu.pipeline_mode<synchronous>, transform_indices = @transform_6, window_bounds = array<i64: 1, 128>}, {pipeline_mode = #tpu.pipeline_mode<synchronous>, transform_indices = @transform_7, window_bounds = array<i64: 1, 128>}, {pipeline_mode = #tpu.pipeline_mode<synchronous>, transform_indices = @transform_8, window_bounds = array<i64: 128, 256>}, {pipeline_mode = #tpu.pipeline_mode<synchronous>, transform_indices = @transform_9, window_bounds = array<i64: 1, 256>}, {pipeline_mode = #tpu.pipeline_mode<synchronous>, transform_indices = @transform_10, window_bounds = array<i64: 1, 256>}, {pipeline_mode = #tpu.pipeline_mode<synchronous>, transform_indices = @transform_11, window_bounds = array<i64: 256, 128>}, {pipeline_mode = #tpu.pipeline_mode<synchronous>, transform_indices = @transform_12, window_bounds = array<i64: 256, 128>}, {pipeline_mode = #tpu.pipeline_mode<synchronous>, transform_indices = @transform_13, window_bounds = array<i64: 1, 128>}, {transform_indices = @transform_14, window_bounds = array<i64: 16, 128>}]} {
    %c0 = arith.constant 0 : index
    %c0_0 = arith.constant 0 : index
    %0 = vector.load %arg1[%c0, %c0_0] : memref<16x128xbf16, #tpu.memory_space<vmem>>, vector<16x128xbf16>
    %c0_1 = arith.constant 0 : index
    %c0_2 = arith.constant 0 : index
    %1 = vector.load %arg2[%c0_1, %c0_2] : memref<16x128xbf16, #tpu.memory_space<vmem>>, vector<16x128xbf16>
    %2 = tpu.concatenate %0, %1 in 0 : vector<16x128xbf16>, vector<16x128xbf16> -> vector<32x128xbf16>
    %c0_3 = arith.constant 0 : index
    %c0_4 = arith.constant 0 : index
    %3 = vector.load %arg4[%c0_3, %c0_4] : memref<1x64xf32, #tpu.memory_space<vmem>>, vector<1x64xf32>
    %c0_5 = arith.constant 0 : index
    %c0_6 = arith.constant 0 : index
    %4 = vector.load %arg5[%c0_5, %c0_6] : memref<1x64xf32, #tpu.memory_space<vmem>>, vector<1x64xf32>
    %c0_7 = arith.constant 0 : index
    %c0_8 = arith.constant 0 : index
    %5 = vector.load %arg7[%c0_7, %c0_8] : memref<1x128xf32, #tpu.memory_space<vmem>>, vector<1x128xf32>
    %c0_9 = arith.constant 0 : index
    %c0_10 = arith.constant 0 : index
    %6 = vector.load %arg8[%c0_9, %c0_10] : memref<1x128xf32, #tpu.memory_space<vmem>>, vector<1x128xf32>
    %c0_11 = arith.constant 0 : index
    %c0_12 = arith.constant 0 : index
    %7 = vector.load %arg10[%c0_11, %c0_12] : memref<1x256xf32, #tpu.memory_space<vmem>>, vector<1x256xf32>
    %c0_13 = arith.constant 0 : index
    %c0_14 = arith.constant 0 : index
    %8 = vector.load %arg11[%c0_13, %c0_14] : memref<1x256xf32, #tpu.memory_space<vmem>>, vector<1x256xf32>
    %c0_15 = arith.constant 0 : index
    %c0_16 = arith.constant 0 : index
    %9 = vector.load %arg3[%c0_15, %c0_16] : memref<128x64xbf16, #tpu.memory_space<vmem>>, vector<128x64xbf16>
    %cst = arith.constant dense<0.000000e+00> : vector<32x64xf32>
    %10 = tpu.matmul %2, %9, %cst {dimension_numbers = #tpu.dot_dimension_numbers<[1], [0], [0], [1], [0, 0, 1, 1], [], []>} : vector<32x128xbf16>, vector<128x64xbf16>, vector<32x64xf32> -> vector<32x64xf32>
    %11 = vector.broadcast %3 : vector<1x64xf32> to vector<32x64xf32>
    %12 = arith.mulf %10, %11 : vector<32x64xf32>
    %13 = vector.broadcast %4 : vector<1x64xf32> to vector<32x64xf32>
    %14 = arith.addf %12, %13 : vector<32x64xf32>
    %cst_17 = arith.constant 0.000000e+00 : f32
    %15 = vector.broadcast %cst_17 : f32 to vector<32x64xf32>
    %16 = arith.cmpf oge, %14, %15 : vector<32x64xf32>
    %cst_18 = arith.constant 2.000000e-01 : f32
    %17 = vector.broadcast %cst_18 : f32 to vector<32x64xf32>
    %18 = arith.mulf %17, %14 : vector<32x64xf32>
    %19 = arith.select %16, %14, %18 : vector<32x64xi1>, vector<32x64xf32>
    %20 = arith.truncf %19 : vector<32x64xf32> to vector<32x64xbf16>
    %c0_19 = arith.constant 0 : index
    %c0_20 = arith.constant 0 : index
    %21 = vector.load %arg6[%c0_19, %c0_20] : memref<64x128xbf16, #tpu.memory_space<vmem>>, vector<64x128xbf16>
    %cst_21 = arith.constant dense<0.000000e+00> : vector<32x128xf32>
    %22 = tpu.matmul %20, %21, %cst_21 {dimension_numbers = #tpu.dot_dimension_numbers<[1], [0], [0], [1], [0, 0, 1, 1], [], []>} : vector<32x64xbf16>, vector<64x128xbf16>, vector<32x128xf32> -> vector<32x128xf32>
    %23 = vector.broadcast %5 : vector<1x128xf32> to vector<32x128xf32>
    %24 = arith.mulf %22, %23 : vector<32x128xf32>
    %25 = vector.broadcast %6 : vector<1x128xf32> to vector<32x128xf32>
    %26 = arith.addf %24, %25 : vector<32x128xf32>
    %cst_22 = arith.constant 0.000000e+00 : f32
    %27 = vector.broadcast %cst_22 : f32 to vector<32x128xf32>
    %28 = arith.cmpf oge, %26, %27 : vector<32x128xf32>
    %cst_23 = arith.constant 2.000000e-01 : f32
    %29 = vector.broadcast %cst_23 : f32 to vector<32x128xf32>
    %30 = arith.mulf %29, %26 : vector<32x128xf32>
    %31 = arith.select %28, %26, %30 : vector<32x128xi1>, vector<32x128xf32>
    %32 = arith.truncf %31 : vector<32x128xf32> to vector<32x128xbf16>
    %c0_24 = arith.constant 0 : index
    %c0_25 = arith.constant 0 : index
    %33 = vector.load %arg9[%c0_24, %c0_25] : memref<128x256xbf16, #tpu.memory_space<vmem>>, vector<128x256xbf16>
    %cst_26 = arith.constant dense<0.000000e+00> : vector<32x256xf32>
    %34 = tpu.matmul %32, %33, %cst_26 {dimension_numbers = #tpu.dot_dimension_numbers<[1], [0], [0], [1], [0, 0, 1, 1], [], []>} : vector<32x128xbf16>, vector<128x256xbf16>, vector<32x256xf32> -> vector<32x256xf32>
    %35 = vector.broadcast %7 : vector<1x256xf32> to vector<32x256xf32>
    %36 = arith.mulf %34, %35 : vector<32x256xf32>
    %37 = vector.broadcast %8 : vector<1x256xf32> to vector<32x256xf32>
    %38 = arith.addf %36, %37 : vector<32x256xf32>
    %cst_27 = arith.constant 0.000000e+00 : f32
    %39 = vector.broadcast %cst_27 : f32 to vector<32x256xf32>
    %40 = arith.cmpf oge, %38, %39 : vector<32x256xf32>
    %cst_28 = arith.constant 2.000000e-01 : f32
    %41 = vector.broadcast %cst_28 : f32 to vector<32x256xf32>
    %42 = arith.mulf %41, %38 : vector<32x256xf32>
    %43 = arith.select %40, %38, %42 : vector<32x256xi1>, vector<32x256xf32>
    %44 = vector.extract_strided_slice %43 {offsets = [0, 0], sizes = [16, 256], strides = [1, 1]} : vector<32x256xf32> to vector<16x256xf32>
    %45 = arith.truncf %44 : vector<16x256xf32> to vector<16x256xbf16>
    %46 = vector.extract_strided_slice %43 {offsets = [16, 0], sizes = [16, 256], strides = [1, 1]} : vector<32x256xf32> to vector<16x256xf32>
    %47 = arith.truncf %46 : vector<16x256xf32> to vector<16x256xbf16>
    %c0_29 = arith.constant 0 : index
    %c0_30 = arith.constant 0 : index
    %48 = vector.load %arg12[%c0_29, %c0_30] : memref<256x128xbf16, #tpu.memory_space<vmem>>, vector<256x128xbf16>
    %cst_31 = arith.constant dense<0.000000e+00> : vector<16x128xf32>
    %49 = tpu.matmul %45, %48, %cst_31 {dimension_numbers = #tpu.dot_dimension_numbers<[1], [0], [0], [1], [0, 0, 1, 1], [], []>} : vector<16x256xbf16>, vector<256x128xbf16>, vector<16x128xf32> -> vector<16x128xf32>
    %c0_32 = arith.constant 0 : index
    %c0_33 = arith.constant 0 : index
    %50 = vector.load %arg13[%c0_32, %c0_33] : memref<256x128xbf16, #tpu.memory_space<vmem>>, vector<256x128xbf16>
    %cst_34 = arith.constant dense<0.000000e+00> : vector<16x128xf32>
    %51 = tpu.matmul %47, %50, %cst_34 {dimension_numbers = #tpu.dot_dimension_numbers<[1], [0], [0], [1], [0, 0, 1, 1], [], []>} : vector<16x256xbf16>, vector<256x128xbf16>, vector<16x128xf32> -> vector<16x128xf32>
    %52 = arith.addf %49, %51 : vector<16x128xf32>
    %c0_35 = arith.constant 0 : index
    %c0_36 = arith.constant 0 : index
    %53 = vector.load %arg14[%c0_35, %c0_36] : memref<1x128xf32, #tpu.memory_space<vmem>>, vector<1x128xf32>
    %54 = vector.broadcast %53 : vector<1x128xf32> to vector<16x128xf32>
    %55 = arith.addf %52, %54 : vector<16x128xf32>
    %c0_37 = arith.constant 0 : index
    %c0_38 = arith.constant 0 : index
    %56 = vector.load %arg15[%c0_37, %c0_38] : memref<16x128xf32, #tpu.memory_space<vmem>>, vector<16x128xf32>
    tpu.vector_store %arg15[%c0_37, %c0_38], %55 {strides = array<i32>} : memref<16x128xf32, #tpu.memory_space<vmem>>, vector<16x128xf32>,
    return
  }
  func.func @transform_0(%arg0: i32) -> (i32, i32) {
    %c0_i32 = arith.constant 0 : i32
    %c0_i32_0 = arith.constant 0 : i32
    return %arg0, %c0_i32 : i32, i32
  }
  func.func @transform_1(%arg0: i32) -> (i32, i32) {
    %c0_i32 = arith.constant 0 : i32
    %c0_i32_0 = arith.constant 0 : i32
    return %arg0, %c0_i32 : i32, i32
  }
  func.func @transform_2(%arg0: i32) -> (i32, i32) {
    %c0_i32 = arith.constant 0 : i32
    %c0_i32_0 = arith.constant 0 : i32
    %c0_i32_1 = arith.constant 0 : i32
    return %c0_i32, %c0_i32_0 : i32, i32
  }
  func.func @transform_3(%arg0: i32) -> (i32, i32) {
    %c0_i32 = arith.constant 0 : i32
    %c0_i32_0 = arith.constant 0 : i32
    %c0_i32_1 = arith.constant 0 : i32
    return %c0_i32, %c0_i32_0 : i32, i32
  }
  func.func @transform_4(%arg0: i32) -> (i32, i32) {
    %c0_i32 = arith.constant 0 : i32
    %c0_i32_0 = arith.constant 0 : i32
    %c0_i32_1 = arith.constant 0 : i32
    return %c0_i32, %c0_i32_0 : i32, i32
  }
  func.func @transform_5(%arg0: i32) -> (i32, i32) {
    %c0_i32 = arith.constant 0 : i32
    %c0_i32_0 = arith.constant 0 : i32
    %c0_i32_1 = arith.constant 0 : i32
    return %c0_i32, %c0_i32_0 : i32, i32
  }
  func.func @transform_6(%arg0: i32) -> (i32, i32) {
    %c0_i32 = arith.constant 0 : i32
    %c0_i32_0 = arith.constant 0 : i32
    %c0_i32_1 = arith.constant 0 : i32
    return %c0_i32, %c0_i32_0 : i32, i32
  }
  func.func @transform_7(%arg0: i32) -> (i32, i32) {
    %c0_i32 = arith.constant 0 : i32
    %c0_i32_0 = arith.constant 0 : i32
    %c0_i32_1 = arith.constant 0 : i32
    return %c0_i32, %c0_i32_0 : i32, i32
  }
  func.func @transform_8(%arg0: i32) -> (i32, i32) {
    %c0_i32 = arith.constant 0 : i32
    %c0_i32_0 = arith.constant 0 : i32
    %c0_i32_1 = arith.constant 0 : i32
    return %c0_i32, %c0_i32_0 : i32, i32
  }
  func.func @transform_9(%arg0: i32) -> (i32, i32) {
    %c0_i32 = arith.constant 0 : i32
    %c0_i32_0 = arith.constant 0 : i32
    %c0_i32_1 = arith.constant 0 : i32
    return %c0_i32, %c0_i32_0 : i32, i32
  }
  func.func @transform_10(%arg0: i32) -> (i32, i32) {
    %c0_i32 = arith.constant 0 : i32
    %c0_i32_0 = arith.constant 0 : i32
    %c0_i32_1 = arith.constant 0 : i32
    return %c0_i32, %c0_i32_0 : i32, i32
  }
  func.func @transform_11(%arg0: i32) -> (i32, i32) {
    %c0_i32 = arith.constant 0 : i32
    %c0_i32_0 = arith.constant 0 : i32
    %c0_i32_1 = arith.constant 0 : i32
    return %c0_i32, %c0_i32_0 : i32, i32
  }
  func.func @transform_12(%arg0: i32) -> (i32, i32) {
    %c0_i32 = arith.constant 0 : i32
    %c0_i32_0 = arith.constant 0 : i32
    %c0_i32_1 = arith.constant 0 : i32
    return %c0_i32, %c0_i32_0 : i32, i32
  }
  func.func @transform_13(%arg0: i32) -> (i32, i32) {
    %c0_i32 = arith.constant 0 : i32
    %c0_i32_0 = arith.constant 0 : i32
    %c0_i32_1 = arith.constant 0 : i32
    return %c0_i32, %c0_i32_0 : i32, i32
  }
  func.func @transform_14(%arg0: i32) -> (i32, i32) {
    %c0_i32 = arith.constant 0 : i32
    %c0_i32_0 = arith.constant 0 : i32
    return %arg0, %c0_i32 : i32, i32
  }
}

</mosaic_0001>

<llo_original>
// kernel: quadrantnet_forward.1
$region0: #{quadrantnet_forward.1}
  #allocation0 [shape = 'u32[]', space=smem, size = 0x4, offset = 0x4, fixed_abs, tag = 'smem constant byte address 0x4 - core index']
  #allocation1 [shape = 'u32[144,128]{1,0:T(1,128)}', space=vmem, size = 0x12000, scoped, tag = 'internal scratch']
  %s0 = inlined_call_operand.vmem [shape: bf16[48,128], index: 0, kind: input, shape index: {}]
  %s1 = inlined_call_operand.vmem [shape: bf16[48,128], index: 1, kind: input, shape index: {}]
  %s2 = inlined_call_operand.vmem [shape: bf16[128,64], index: 2, kind: input, shape index: {}]
  %s3 = inlined_call_operand.vmem [shape: f32[1,64], index: 3, kind: input, shape index: {}]
  %s4 = inlined_call_operand.vmem [shape: f32[1,64], index: 4, kind: input, shape index: {}]
  %s5 = inlined_call_operand.vmem [shape: bf16[64,128], index: 5, kind: input, shape index: {}]
  %s6 = inlined_call_operand.vmem [shape: f32[1,128], index: 6, kind: input, shape index: {}]
  %s7 = inlined_call_operand.vmem [shape: f32[1,128], index: 7, kind: input, shape index: {}]
  %s8 = inlined_call_operand.vmem [shape: bf16[128,256], index: 8, kind: input, shape index: {}]
  %s9 = inlined_call_operand.vmem [shape: f32[1,256], index: 9, kind: input, shape index: {}]
  %s10 = inlined_call_operand.vmem [shape: f32[1,256], index: 10, kind: input, shape index: {}]
  %s11 = inlined_call_operand.vmem [shape: bf16[256,128], index: 11, kind: input, shape index: {}]
  %s12 = inlined_call_operand.vmem [shape: bf16[256,128], index: 12, kind: input, shape index: {}]
  %s13 = inlined_call_operand.vmem [shape: f32[1,128], index: 13, kind: input, shape index: {}]
  %s14 = inlined_call_operand.vmem [shape: f32[48,128], index: 14, kind: output, shape index: {}]
  %s15 = sld [smem:[#allocation0]]
  $region89: #{quadrantnet_forward.1} parent=0
    _
  %s17 = ssub.s32 1, %s15
  %s18 = scalar_select 0, %s17, %s15
  loop: start=0, step=1, limit=5
  $region2: #{quadrantnet_forward.1} parent=0 // loop_pre_header
    _
  $region3: #{quadrantnet_forward.1} parent=0 // loop_header
    %s20 = sphi 0, %s24
    %p21 = scmp.ge.s32.totalorder %s20, 5
    %s30 = sphi 0, %s32
    %s33 = sphi 0, %s30
    %s34 = sphi 0, %s33
    %s50 = sphi 0, %s34
    %s56 = sphi 0, %s58
    %s59 = sphi 0, %s56
    %s60 = sphi 0, %s59
    %s76 = sphi 0, %s60
    %s80 = sphi 0, %s80
    %s82 = sphi 0, %s80
    %s83 = sphi 0, %s82
    %s97 = sphi 0, %s83
    %s101 = sphi 0, %s101
    %s103 = sphi 0, %s101
    %s104 = sphi 0, %s103
    %s118 = sphi 0, %s104
    %s122 = sphi 0, %s122
    %s124 = sphi 0, %s122
    %s125 = sphi 0, %s124
    %s139 = sphi 0, %s125
    %s143 = sphi 0, %s143
    %s145 = sphi 0, %s143
    %s146 = sphi 0, %s145
    %s160 = sphi 0, %s146
    %s164 = sphi 0, %s164
    %s166 = sphi 0, %s164
    %s167 = sphi 0, %s166
    %s181 = sphi 0, %s167
    %s185 = sphi 0, %s185
    %s187 = sphi 0, %s185
    %s188 = sphi 0, %s187
    %s202 = sphi 0, %s188
    %s206 = sphi 0, %s206
    %s208 = sphi 0, %s206
    %s209 = sphi 0, %s208
    %s223 = sphi 0, %s209
    %s227 = sphi 0, %s227
    %s229 = sphi 0, %s227
    %s230 = sphi 0, %s229
    %s244 = sphi 0, %s230
    %s248 = sphi 0, %s248
    %s250 = sphi 0, %s248
    %s251 = sphi 0, %s250
    %s265 = sphi 0, %s251
    %s269 = sphi 0, %s269
    %s271 = sphi 0, %s269
    %s272 = sphi 0, %s271
    %s286 = sphi 0, %s272
    %s290 = sphi 0, %s290
    %s292 = sphi 0, %s290
    %s293 = sphi 0, %s292
    %s307 = sphi 0, %s293
    %s311 = sphi 0, %s311
    %s313 = sphi 0, %s311
    %s314 = sphi 0, %s313
    %s328 = sphi 0, %s314
    %s334 = sphi 0, %s336
    %s337 = sphi 0, %s334
    %s338 = sphi 0, %s337
    %s354 = sphi 0, %s338
  $region4: #{quadrantnet_forward.1} parent=0 // loop_header_branch
    %23 = sbr.rel (%p21) target = $region8
  $region5: #{quadrantnet_forward.1} parent=0 // loop_body
    %s25 = ssub.s32 %s20, 1
    %s26 = ssub.s32 %s20, 2
    %s27 = sadd.s32 %s20, 1
    %s28 = ssub.s32 %s20, %s27
    %p29 = scmp.eq.s32.totalorder %s28, 0
    %s31 = sadd.s32 %s30, 1
    %s32 = scalar_select %p29, %s30, %s31
    %p35 = pneg %p29
    %p36 = scmp.eq.s32.totalorder %s20, 2
    %p37 = por %p35, %p36
    %p38 = scmp.ne.s32.totalorder %s30, %s33
    %p39 = scmp.eq.s32.totalorder %s20, 0
    %p40 = por %p38, %p39
    %p41 = scmp.ne.s32.totalorder %s30, %s33
    %p42 = scmp.eq.s32.totalorder %s25, 2
    %p43 = por %p41, %p42
    %p44 = scmp.ne.s32.totalorder %s33, %s34
    %p45 = scmp.eq.s32.totalorder %s25, 0
    %p46 = por %p44, %p45
    %p47 = scmp.ne.s32.totalorder %s33, %s34
    %p48 = scmp.eq.s32.totalorder %s26, 2
    %p49 = por %p47, %p48
    %p51 = scmp.ne.s32.totalorder %s34, %s50
    %p52 = scmp.eq.s32.totalorder %s26, 0
    %p53 = por %p51, %p52
    %s54 = ssub.s32 %s20, %s27
    %p55 = scmp.eq.s32.totalorder %s54, 0
    %s57 = sadd.s32 %s56, 1
    %s58 = scalar_select %p55, %s56, %s57
    %p61 = pneg %p55
    %p62 = scmp.eq.s32.totalorder %s20, 2
    %p63 = por %p61, %p62
    %p64 = scmp.ne.s32.totalorder %s56, %s59
    %p65 = scmp.eq.s32.totalorder %s20, 0
    %p66 = por %p64, %p65
    %p67 = scmp.ne.s32.totalorder %s56, %s59
    %p68 = scmp.eq.s32.totalorder %s25, 2
    %p69 = por %p67, %p68
    %p70 = scmp.ne.s32.totalorder %s59, %s60
    %p71 = scmp.eq.s32.totalorder %s25, 0
    %p72 = por %p70, %p71
    %p73 = scmp.ne.s32.totalorder %s59, %s60
    %p74 = scmp.eq.s32.totalorder %s26, 2
    %p75 = por %p73, %p74
    %p77 = scmp.ne.s32.totalorder %s60, %s76
    %p78 = scmp.eq.s32.totalorder %s26, 0
    %p79 = por %p77, %p78
    %s81 = sadd.s32 %s80, 1
    %p84 = scmp.eq.s32.totalorder %s20, 2
    %p85 = scmp.ne.s32.totalorder %s80, %s82
    %p86 = scmp.eq.s32.totalorder %s20, 0
    %p87 = por %p85, %p86
    %p88 = scmp.ne.s32.totalorder %s80, %s82
    %p89 = scmp.eq.s32.totalorder %s25, 2
    %p90 = por %p88, %p89
    %p91 = scmp.ne.s32.totalorder %s82, %s83
    %p92 = scmp.eq.s32.totalorder %s25, 0
    %p93 = por %p91, %p92
    %p94 = scmp.ne.s32.totalorder %s82, %s83
    %p95 = scmp.eq.s32.totalorder %s26, 2
    %p96 = por %p94, %p95
    %p98 = scmp.ne.s32.totalorder %s83, %s97
    %p99 = scmp.eq.s32.totalorder %s26, 0
    %p100 = por %p98, %p99
    %s102 = sadd.s32 %s101, 1
    %p105 = scmp.eq.s32.totalorder %s20, 2
    %p106 = scmp.ne.s32.totalorder %s101, %s103
    %p107 = scmp.eq.s32.totalorder %s20, 0
    %p108 = por %p106, %p107
    %p109 = scmp.ne.s32.totalorder %s101, %s103
    %p110 = scmp.eq.s32.totalorder %s25, 2
    %p111 = por %p109, %p110
    %p112 = scmp.ne.s32.totalorder %s103, %s104
    %p113 = scmp.eq.s32.totalorder %s25, 0
    %p114 = por %p112, %p113
    %p115 = scmp.ne.s32.totalorder %s103, %s104
    %p116 = scmp.eq.s32.totalorder %s26, 2
    %p117 = por %p115, %p116
    %p119 = scmp.ne.s32.totalorder %s104, %s118
    %p120 = scmp.eq.s32.totalorder %s26, 0
    %p121 = por %p119, %p120
    %s123 = sadd.s32 %s122, 1
    %p126 = scmp.eq.s32.totalorder %s20, 2
    %p127 = scmp.ne.s32.totalorder %s122, %s124
    %p128 = scmp.eq.s32.totalorder %s20, 0
    %p129 = por %p127, %p128
    %p130 = scmp.ne.s32.totalorder %s122, %s124
    %p131 = scmp.eq.s32.totalorder %s25, 2
    %p132 = por %p130, %p131
    %p133 = scmp.ne.s32.totalorder %s124, %s125
    %p134 = scmp.eq.s32.totalorder %s25, 0
    %p135 = por %p133, %p134
    %p136 = scmp.ne.s32.totalorder %s124, %s125
    %p137 = scmp.eq.s32.totalorder %s26, 2
    %p138 = por %p136, %p137
    %p140 = scmp.ne.s32.totalorder %s125, %s139
    %p141 = scmp.eq.s32.totalorder %s26, 0
    %p142 = por %p140, %p141
    %s144 = sadd.s32 %s143, 1
    %p147 = scmp.eq.s32.totalorder %s20, 2
    %p148 = scmp.ne.s32.totalorder %s143, %s145
    %p149 = scmp.eq.s32.totalorder %s20, 0
    %p150 = por %p148, %p149
    %p151 = scmp.ne.s32.totalorder %s143, %s145
    %p152 = scmp.eq.s32.totalorder %s25, 2
    %p153 = por %p151, %p152
    %p154 = scmp.ne.s32.totalorder %s145, %s146
    %p155 = scmp.eq.s32.totalorder %s25, 0
    %p156 = por %p154, %p155
    %p157 = scmp.ne.s32.totalorder %s145, %s146
    %p158 = scmp.eq.s32.totalorder %s26, 2
    %p159 = por %p157, %p158
    %p161 = scmp.ne.s32.totalorder %s146, %s160
    %p162 = scmp.eq.s32.totalorder %s26, 0
    %p163 = por %p161, %p162
    %s165 = sadd.s32 %s164, 1
    %p168 = scmp.eq.s32.totalorder %s20, 2
    %p169 = scmp.ne.s32.totalorder %s164, %s166
    %p170 = scmp.eq.s32.totalorder %s20, 0
    %p171 = por %p169, %p170
    %p172 = scmp.ne.s32.totalorder %s164, %s166
    %p173 = scmp.eq.s32.totalorder %s25, 2
    %p174 = por %p172, %p173
    %p175 = scmp.ne.s32.totalorder %s166, %s167
    %p176 = scmp.eq.s32.totalorder %s25, 0
    %p177 = por %p175, %p176
    %p178 = scmp.ne.s32.totalorder %s166, %s167
    %p179 = scmp.eq.s32.totalorder %s26, 2
    %p180 = por %p178, %p179
    %p182 = scmp.ne.s32.totalorder %s167, %s181
    %p183 = scmp.eq.s32.totalorder %s26, 0
    %p184 = por %p182, %p183
    %s186 = sadd.s32 %s185, 1
    %p189 = scmp.eq.s32.totalorder %s20, 2
    %p190 = scmp.ne.s32.totalorder %s185, %s187
    %p191 = scmp.eq.s32.totalorder %s20, 0
    %p192 = por %p190, %p191
    %p193 = scmp.ne.s32.totalorder %s185, %s187
    %p194 = scmp.eq.s32.totalorder %s25, 2
    %p195 = por %p193, %p194
    %p196 = scmp.ne.s32.totalorder %s187, %s188
    %p197 = scmp.eq.s32.totalorder %s25, 0
    %p198 = por %p196, %p197
    %p199 = scmp.ne.s32.totalorder %s187, %s188
    %p200 = scmp.eq.s32.totalorder %s26, 2
    %p201 = por %p199, %p200
    %p203 = scmp.ne.s32.totalorder %s188, %s202
    %p204 = scmp.eq.s32.totalorder %s26, 0
    %p205 = por %p203, %p204
    %s207 = sadd.s32 %s206, 1
    %p210 = scmp.eq.s32.totalorder %s20, 2
    %p211 = scmp.ne.s32.totalorder %s206, %s208
    %p212 = scmp.eq.s32.totalorder %s20, 0
    %p213 = por %p211, %p212
    %p214 = scmp.ne.s32.totalorder %s206, %s208
    %p215 = scmp.eq.s32.totalorder %s25, 2
    %p216 = por %p214, %p215
    %p217 = scmp.ne.s32.totalorder %s208, %s209
    %p218 = scmp.eq.s32.totalorder %s25, 0
    %p219 = por %p217, %p218
    %p220 = scmp.ne.s32.totalorder %s208, %s209
    %p221 = scmp.eq.s32.totalorder %s26, 2
    %p222 = por %p220, %p221
    %p224 = scmp.ne.s32.totalorder %s209, %s223
    %p225 = scmp.eq.s32.totalorder %s26, 0
    %p226 = por %p224, %p225
    %s228 = sadd.s32 %s227, 1
    %p231 = scmp.eq.s32.totalorder %s20, 2
    %p232 = scmp.ne.s32.totalorder %s227, %s229
    %p233 = scmp.eq.s32.totalorder %s20, 0
    %p234 = por %p232, %p233
    %p235 = scmp.ne.s32.totalorder %s227, %s229
    %p236 = scmp.eq.s32.totalorder %s25, 2
    %p237 = por %p235, %p236
    %p238 = scmp.ne.s32.totalorder %s229, %s230
    %p239 = scmp.eq.s32.totalorder %s25, 0
    %p240 = por %p238, %p239
    %p241 = scmp.ne.s32.totalorder %s229, %s230
    %p242 = scmp.eq.s32.totalorder %s26, 2
    %p243 = por %p241, %p242
    %p245 = scmp.ne.s32.totalorder %s230, %s244
    %p246 = scmp.eq.s32.totalorder %s26, 0
    %p247 = por %p245, %p246
    %s249 = sadd.s32 %s248, 1
    %p252 = scmp.eq.s32.totalorder %s20, 2
    %p253 = scmp.ne.s32.totalorder %s248, %s250
    %p254 = scmp.eq.s32.totalorder %s20, 0
    %p255 = por %p253, %p254
    %p256 = scmp.ne.s32.totalorder %s248, %s250
    %p257 = scmp.eq.s32.totalorder %s25, 2
    %p258 = por %p256, %p257
    %p259 = scmp.ne.s32.totalorder %s250, %s251
    %p260 = scmp.eq.s32.totalorder %s25, 0
    %p261 = por %p259, %p260
    %p262 = scmp.ne.s32.totalorder %s250, %s251
    %p263 = scmp.eq.s32.totalorder %s26, 2
    %p264 = por %p262, %p263
    %p266 = scmp.ne.s32.totalorder %s251, %s265
    %p267 = scmp.eq.s32.totalorder %s26, 0
    %p268 = por %p266, %p267
    %s270 = sadd.s32 %s269, 1
    %p273 = scmp.eq.s32.totalorder %s20, 2
    %p274 = scmp.ne.s32.totalorder %s269, %s271
    %p275 = scmp.eq.s32.totalorder %s20, 0
    %p276 = por %p274, %p275
    %p277 = scmp.ne.s32.totalorder %s269, %s271
    %p278 = scmp.eq.s32.totalorder %s25, 2
    %p279 = por %p277, %p278
    %p280 = scmp.ne.s32.totalorder %s271, %s272
    %p281 = scmp.eq.s32.totalorder %s25, 0
    %p282 = por %p280, %p281
    %p283 = scmp.ne.s32.totalorder %s271, %s272
    %p284 = scmp.eq.s32.totalorder %s26, 2
    %p285 = por %p283, %p284
    %p287 = scmp.ne.s32.totalorder %s272, %s286
    %p288 = scmp.eq.s32.totalorder %s26, 0
    %p289 = por %p287, %p288
    %s291 = sadd.s32 %s290, 1
    %p294 = scmp.eq.s32.totalorder %s20, 2
    %p295 = scmp.ne.s32.totalorder %s290, %s292
    %p296 = scmp.eq.s32.totalorder %s20, 0
    %p297 = por %p295, %p296
    %p298 = scmp.ne.s32.totalorder %s290, %s292
    %p299 = scmp.eq.s32.totalorder %s25, 2
    %p300 = por %p298, %p299
    %p301 = scmp.ne.s32.totalorder %s292, %s293
    %p302 = scmp.eq.s32.totalorder %s25, 0
    %p303 = por %p301, %p302
    %p304 = scmp.ne.s32.totalorder %s292, %s293
    %p305 = scmp.eq.s32.totalorder %s26, 2
    %p306 = por %p304, %p305
    %p308 = scmp.ne.s32.totalorder %s293, %s307
    %p309 = scmp.eq.s32.totalorder %s26, 0
    %p310 = por %p308, %p309
    %s312 = sadd.s32 %s311, 1
    %p315 = scmp.eq.s32.totalorder %s20, 2
    %p316 = scmp.ne.s32.totalorder %s311, %s313
    %p317 = scmp.eq.s32.totalorder %s20, 0
    %p318 = por %p316, %p317
    %p319 = scmp.ne.s32.totalorder %s311, %s313
    %p320 = scmp.eq.s32.totalorder %s25, 2
    %p321 = por %p319, %p320
    %p322 = scmp.ne.s32.totalorder %s313, %s314
    %p323 = scmp.eq.s32.totalorder %s25, 0
    %p324 = por %p322, %p323
    %p325 = scmp.ne.s32.totalorder %s313, %s314
    %p326 = scmp.eq.s32.totalorder %s26, 2
    %p327 = por %p325, %p326
    %p329 = scmp.ne.s32.totalorder %s314, %s328
    %p330 = scmp.eq.s32.totalorder %s26, 0
    %p331 = por %p329, %p330
    %s332 = ssub.s32 %s20, %s27
    %p333 = scmp.eq.s32.totalorder %s332, 0
    %s335 = sadd.s32 %s334, 1
    %s336 = scalar_select %p333, %s334, %s335
    %p339 = pneg %p333
    %p340 = scmp.eq.s32.totalorder %s20, 2
    %p341 = por %p339, %p340
    %p342 = scmp.ne.s32.totalorder %s334, %s337
    %p343 = scmp.eq.s32.totalorder %s20, 0
    %p344 = por %p342, %p343
    %p345 = scmp.ne.s32.totalorder %s334, %s337
    %p346 = scmp.eq.s32.totalorder %s25, 2
    %p347 = por %p345, %p346
    %p348 = scmp.ne.s32.totalorder %s337, %s338
    %p349 = scmp.eq.s32.totalorder %s25, 0
    %p350 = por %p348, %p349
    %p351 = scmp.ne.s32.totalorder %s337, %s338
    %p352 = scmp.eq.s32.totalorder %s26, 2
    %p353 = por %p351, %p352
    %p355 = scmp.ne.s32.totalorder %s338, %s354
    %p356 = scmp.eq.s32.totalorder %s26, 0
    %p357 = por %p355, %p356
    %p358 = scmp.le.s32.totalorder 1, %s20
    %p359 = scmp.lt.s32.totalorder %s20, 4
    %p360 = pnand %p358, %p359
    %p361 = pneg %p360
    // Predicated region
    $region9: #{quadrantnet_forward.1} parent=5 // pred_check
      _
    $region10: #{quadrantnet_forward.1} parent=5 // pred_check_branch
      %363 = sbr.rel (%p360) target = $region12
    $region11: #{quadrantnet_forward.1} parent=5 // pred_region
      %s364 = ssub.s32 %s20, 1
      // Predicated region
      $region13: #{quadrantnet_forward.1} parent=11 // pred_check
        %p365 = pneg %p93
      $region14: #{quadrantnet_forward.1} parent=11 // pred_check_branch
        %367 = sbr.rel (%p365) target = $region16
      $region15: #{quadrantnet_forward.1} parent=11 // pred_region
        _
      $region16: #{quadrantnet_forward.1} parent=11 // pred_fallthru
        _
      // Predicated region
      $region17: #{quadrantnet_forward.1} parent=11 // pred_check
        %p368 = pneg %p114
      $region18: #{quadrantnet_forward.1} parent=11 // pred_check_branch
        %370 = sbr.rel (%p368) target = $region20
      $region19: #{quadrantnet_forward.1} parent=11 // pred_region
        _
      $region20: #{quadrantnet_forward.1} parent=11 // pred_fallthru
        _
      // Predicated region
      $region21: #{quadrantnet_forward.1} parent=11 // pred_check
        %p371 = pneg %p135
      $region22: #{quadrantnet_forward.1} parent=11 // pred_check_branch
        %373 = sbr.rel (%p371) target = $region24
      $region23: #{quadrantnet_forward.1} parent=11 // pred_region
        _
      $region24: #{quadrantnet_forward.1} parent=11 // pred_fallthru
        _
      // Predicated region
      $region25: #{quadrantnet_forward.1} parent=11 // pred_check
        %p374 = pneg %p156
      $region26: #{quadrantnet_forward.1} parent=11 // pred_check_branch
        %376 = sbr.rel (%p374) target = $region28
      $region27: #{quadrantnet_forward.1} parent=11 // pred_region
        _
      $region28: #{quadrantnet_forward.1} parent=11 // pred_fallthru
        _
      // Predicated region
      $region29: #{quadrantnet_forward.1} parent=11 // pred_check
        %p377 = pneg %p177
      $region30: #{quadrantnet_forward.1} parent=11 // pred_check_branch
        %379 = sbr.rel (%p377) target = $region32
      $region31: #{quadrantnet_forward.1} parent=11 // pred_region
        _
      $region32: #{quadrantnet_forward.1} parent=11 // pred_fallthru
        _
      // Predicated region
      $region33: #{quadrantnet_forward.1} parent=11 // pred_check
        %p380 = pneg %p198
      $region34: #{quadrantnet_forward.1} parent=11 // pred_check_branch
        %382 = sbr.rel (%p380) target = $region36
      $region35: #{quadrantnet_forward.1} parent=11 // pred_region
        _
      $region36: #{quadrantnet_forward.1} parent=11 // pred_fallthru
        _
      // Predicated region
      $region37: #{quadrantnet_forward.1} parent=11 // pred_check
        %p383 = pneg %p219
      $region38: #{quadrantnet_forward.1} parent=11 // pred_check_branch
        %385 = sbr.rel (%p383) target = $region40
      $region39: #{quadrantnet_forward.1} parent=11 // pred_region
        _
      $region40: #{quadrantnet_forward.1} parent=11 // pred_fallthru
        _
      // Predicated region
      $region41: #{quadrantnet_forward.1} parent=11 // pred_check
        %p386 = pneg %p240
      $region42: #{quadrantnet_forward.1} parent=11 // pred_check_branch
        %388 = sbr.rel (%p386) target = $region44
      $region43: #{quadrantnet_forward.1} parent=11 // pred_region
        _
      $region44: #{quadrantnet_forward.1} parent=11 // pred_fallthru
        _
      // Predicated region
      $region45: #{quadrantnet_forward.1} parent=11 // pred_check
        %p389 = pneg %p261
      $region46: #{quadrantnet_forward.1} parent=11 // pred_check_branch
        %391 = sbr.rel (%p389) target = $region48
      $region47: #{quadrantnet_forward.1} parent=11 // pred_region
        _
      $region48: #{quadrantnet_forward.1} parent=11 // pred_fallthru
        _
      // Predicated region
      $region49: #{quadrantnet_forward.1} parent=11 // pred_check
        %p392 = pneg %p282
      $region50: #{quadrantnet_forward.1} parent=11 // pred_check_branch
        %394 = sbr.rel (%p392) target = $region52
      $region51: #{quadrantnet_forward.1} parent=11 // pred_region
        _
      $region52: #{quadrantnet_forward.1} parent=11 // pred_fallthru
        _
      // Predicated region
      $region53: #{quadrantnet_forward.1} parent=11 // pred_check
        %p395 = pneg %p303
      $region54: #{quadrantnet_forward.1} parent=11 // pred_check_branch
        %397 = sbr.rel (%p395) target = $region56
      $region55: #{quadrantnet_forward.1} parent=11 // pred_region
        _
      $region56: #{quadrantnet_forward.1} parent=11 // pred_fallthru
        _
      // Predicated region
      $region57: #{quadrantnet_forward.1} parent=11 // pred_check
        %p398 = pneg %p324
      $region58: #{quadrantnet_forward.1} parent=11 // pred_check_branch
        %400 = sbr.rel (%p398) target = $region60
      $region59: #{quadrantnet_forward.1} parent=11 // pred_region
        _
      $region60: #{quadrantnet_forward.1} parent=11 // pred_fallthru
        _
    $region12: #{quadrantnet_forward.1} parent=5 // pred_fallthru
      _
    %p401 = scmp.lt.s32.totalorder %s20, 3
    // Predicated region
    $region61: #{quadrantnet_forward.1} parent=5 // pred_check
      %p402 = pneg %p401
    $region62: #{quadrantnet_forward.1} parent=5 // pred_check_branch
      %404 = sbr.rel (%p402) target = $region64
    $region63: #{quadrantnet_forward.1} parent=5 // pred_region
      // Predicated region
      $region65: #{quadrantnet_forward.1} parent=63 // pred_check
        %p405 = pneg %p40
      $region66: #{quadrantnet_forward.1} parent=63 // pred_check_branch
        %407 = sbr.rel (%p405) target = $region68
      $region67: #{quadrantnet_forward.1} parent=63 // pred_region
        %s408 = smul.u32 2, %s20
        %p409 = scmp.lt.s32.totalorder %s408, 5
        %s410 = scalar_select %p409, %s408, 5
        %s411 = smul.addr %s410, 4
        %s412 = scalar_lea.vmem %s0, %s411
        %s413 = smul.u32 2, %s20
      $region68: #{quadrantnet_forward.1} parent=63 // pred_fallthru
        _
      // Predicated region
      $region69: #{quadrantnet_forward.1} parent=63 // pred_check
        %p414 = pneg %p66
      $region70: #{quadrantnet_forward.1} parent=63 // pred_check_branch
        %416 = sbr.rel (%p414) target = $region72
      $region71: #{quadrantnet_forward.1} parent=63 // pred_region
        %s417 = smul.u32 2, %s20
        %p418 = scmp.lt.s32.totalorder %s417, 5
        %s419 = scalar_select %p418, %s417, 5
        %s420 = smul.addr %s419, 4
        %s421 = scalar_lea.vmem %s1, %s420
        %s422 = smul.u32 2, %s20
      $region72: #{quadrantnet_forward.1} parent=63 // pred_fallthru
        _
    $region64: #{quadrantnet_forward.1} parent=5 // pred_fallthru
      _
    %p423 = scmp.le.s32.totalorder 1, %s20
    %p424 = scmp.lt.s32.totalorder %s20, 4
    %p425 = pnand %p423, %p424
    %p426 = pneg %p425
    // Predicated region
    $region73: #{quadrantnet_forward.1} parent=5 // pred_check
      _
    $region74: #{quadrantnet_forward.1} parent=5 // pred_check_branch
      %428 = sbr.rel (%p425) target = $region76
    $region75: #{quadrantnet_forward.1} parent=5 // pred_region
      %s429 = ssub.s32 %s20, 1
      %s430 = smul.u32 2, %s25
      %p431 = scmp.lt.s32.totalorder %s430, 5
      %s432 = scalar_select %p431, %s430, 5
      %s433 = smul.addr %s432, 4
      %s434 = scalar_lea.vmem %s0, %s433
      %p435 = pneg %p46
      %p436 = pneg %p43
      %s437 = smul.u32 2, %s25
      %p438 = scmp.lt.s32.totalorder %s437, 5
      %s439 = scalar_select %p438, %s437, 5
      %s440 = smul.addr %s439, 4
      %s441 = scalar_lea.vmem %s1, %s440
      %p442 = pneg %p72
      %p443 = pneg %p69
      %p444 = pneg %p93
      %p445 = pneg %p90
      %p446 = pneg %p114
      %p447 = pneg %p111
      %p448 = pneg %p135
      %p449 = pneg %p132
      %p450 = pneg %p156
      %p451 = pneg %p153
      %p452 = pneg %p177
      %p453 = pneg %p174
      %p454 = pneg %p198
      %p455 = pneg %p195
      %p456 = pneg %p219
      %p457 = pneg %p216
      %p458 = pneg %p240
      %p459 = pneg %p237
      %p460 = pneg %p261
      %p461 = pneg %p258
      %p462 = pneg %p282
      %p463 = pneg %p279
      %p464 = pneg %p303
      %p465 = pneg %p300
      %p466 = pneg %p324
      %p467 = pneg %p321
      %p468 = pneg %p350
      %p469 = pneg %p347
      %s470 = smul.u32 2, %s25
      %p471 = scmp.lt.s32.totalorder %s470, 5
      %s472 = scalar_select %p471, %s470, 5
      %s473 = smul.addr %s472, 8
      %s474 = scalar_lea.vmem %s14, %s473
      %s475 = smul.u32 2, %s25
      %p476 = scmp.lt.s32.totalorder %s475, 5
      %s477 = scalar_select %p476, %s475, 5
      %s478 = smul.addr %s477, 4
      %s479 = scalar_lea.vmem %s0, %s478
      %s480 = smul.u32 2, %s25
      %s481 = smul.u32 2, %s25
      %p482 = scmp.lt.s32.totalorder %s481, 5
      %s483 = scalar_select %p482, %s481, 5
      %s484 = smul.addr %s483, 4
      %s485 = scalar_lea.vmem %s1, %s484
      %s486 = smul.u32 2, %s25
      %s487 = smul.u32 2, %s25
      %p488 = scmp.lt.s32.totalorder %s487, 5
      %s489 = scalar_select %p488, %s487, 5
      %s490 = smul.addr %s489, 8
      %s491 = scalar_lea.vmem %s14, %s490
      %s492 = smul.u32 2, %s25
      %v494 = vld [vmem:[%s479] sm:$0xf]
      %v495 = vld [vmem:[%s479 + $0x4] sm:$0xf]
      %v496 = vld [vmem:[%s485] sm:$0xf]
      %v497 = vld [vmem:[%s485 + $0x4] sm:$0xf]
      %v500 = vunpack.c.l.b16 %v494
      %v501 = vunpack.c.l.b16 %v495
      %v502 = vpack.c.b16 %v501, %v500
      %v506 = vunpack.c.l.b16 %v496
      %v507 = vunpack.c.l.b16 %v497
      %v508 = vpack.c.b16 %v507, %v506
      %v510 = vld [vmem:[%s3] sm:$0x1]
      %v511 = vld [vmem:[%s4] sm:$0x1]
      %v512 = vld [vmem:[%s6] sm:$0x1]
      %v513 = vld [vmem:[%s7] sm:$0x1]
      %v514 = vld [vmem:[%s9] sm:$0x3]
      %v515 = vld [vmem:[%s10] sm:$0x3]
      %v516 = vld [vmem:[%s2] sm:$0xf]
      %v517 = vld [vmem:[%s2 + $0x4] sm:$0xf]
      %v518 = vld [vmem:[%s2 + $0x8] sm:$0xf]
      %v519 = vld [vmem:[%s2 + $0xc] sm:$0xf]
      %v520 = vld [vmem:[%s2 + $0x10] sm:$0xf]
      %v521 = vld [vmem:[%s2 + $0x14] sm:$0xf]
      %v522 = vld [vmem:[%s2 + $0x18] sm:$0xf]
      %v523 = vld [vmem:[%s2 + $0x1c] sm:$0xf]
      %v524 = vld [vmem:[%s2 + $0x20] sm:$0xf]
      %v525 = vld [vmem:[%s2 + $0x24] sm:$0xf]
      %v526 = vld [vmem:[%s2 + $0x28] sm:$0xf]
      %v527 = vld [vmem:[%s2 + $0x2c] sm:$0xf]
      %v528 = vld [vmem:[%s2 + $0x30] sm:$0xf]
      %v529 = vld [vmem:[%s2 + $0x34] sm:$0xf]
      %v530 = vld [vmem:[%s2 + $0x38] sm:$0xf]
      %v531 = vld [vmem:[%s2 + $0x3c] sm:$0xf]
      %v548 = vunpack.c.l.b16 %v516
      %v549 = vunpack.c.l.b16 %v517
      %v550 = vunpack.c.l.b16 %v518
      %v551 = vunpack.c.l.b16 %v519
      %v552 = vunpack.c.l.b16 %v520
      %v553 = vunpack.c.l.b16 %v521
      %v554 = vunpack.c.l.b16 %v522
      %v555 = vunpack.c.l.b16 %v523
      %v556 = vunpack.c.l.b16 %v524
      %v557 = vunpack.c.l.b16 %v525
      %v558 = vunpack.c.l.b16 %v526
      %v559 = vunpack.c.l.b16 %v527
      %v560 = vunpack.c.l.b16 %v528
      %v561 = vunpack.c.l.b16 %v529
      %v562 = vunpack.c.l.b16 %v530
      %v563 = vunpack.c.l.b16 %v531
      %v564 = vpack.c.b16 %v549, %v548
      %v565 = vpack.c.b16 %v551, %v550
      %v566 = vpack.c.b16 %v553, %v552
      %v567 = vpack.c.b16 %v555, %v554
      %v568 = vpack.c.b16 %v557, %v556
      %v569 = vpack.c.b16 %v559, %v558
      %v570 = vpack.c.b16 %v561, %v560
      %v571 = vpack.c.b16 %v563, %v562
      %580 = vmatprep.subr.bf16.mxu0 0
      %581 = vmatpush1.bf16.msra.mxu0 %v564
      %582 = vmatprep.subr.bf16.mxu0 0
      %583 = vmatpush1.bf16.msra.mxu0 %v565
      %584 = vmatprep.subr.bf16.mxu0 0
      %585 = vmatpush1.bf16.msra.mxu0 %v566
      %586 = vmatprep.subr.bf16.mxu0 0
      %587 = vmatpush1.bf16.msra.mxu0 %v567
      %588 = vmatprep.subr.bf16.mxu0 0
      %589 = vmatpush1.bf16.msra.mxu0 %v568
      %590 = vmatprep.subr.bf16.mxu0 0
      %591 = vmatpush1.bf16.msra.mxu0 %v569
      %592 = vmatprep.subr.bf16.mxu0 0
      %593 = vmatpush1.bf16.msra.mxu0 %v570
      %594 = vmatprep.subr.bf16.mxu0 0
      %595 = vmatpush1.bf16.msra.mxu0 %v571
      %596 = vmatprep.subr.bf16.mxu0 0
      %597 = vmatpush1.bf16.msra.mxu0 0
      %598 = vmatprep.subr.bf16.mxu0 0
      %599 = vmatpush1.bf16.msra.mxu0 0
      %600 = vmatprep.subr.bf16.mxu0 0
      %601 = vmatpush1.bf16.msra.mxu0 0
      %602 = vmatprep.subr.bf16.mxu0 0
      %603 = vmatpush1.bf16.msra.mxu0 0
      %604 = vmatprep.subr.bf16.mxu0 0
      %605 = vmatpush1.bf16.msra.mxu0 0
      %606 = vmatprep.subr.bf16.mxu0 0
      %607 = vmatpush1.bf16.msra.mxu0 0
      %608 = vmatprep.subr.bf16.mxu0 0
      %609 = vmatpush1.bf16.msra.mxu0 0
      %610 = vmatprep.subr.bf16.mxu0 0
      %611 = vmatpush1.bf16.msra.mxu0 0
      %612 = vmatprep.mubr.bf16.mxu0 0
      %613 = vmatmul.mubr.bf16.gmra.mrb[0].mxu0 %v502
      %v614 = vpop.f32.mrb[0].mxu0
      %v615 = vadd.f32 0.0, %v614
      %v616 = vpop.f32.mrb[0].mxu0
      %v617 = vpop.f32.mrb[0].mxu0
      %v618 = vadd.f32 0.0, %v617
      %v619 = vpop.f32.mrb[0].mxu0
      %620 = vmatprep.mubr.bf16.mxu0 0
      %621 = vmatmul.mubr.bf16.gmra.mrb[0].mxu0 %v508
      %v622 = vpop.f32.mrb[0].mxu0
      %v623 = vadd.f32 0.0, %v622
      %v624 = vpop.f32.mrb[0].mxu0
      %v625 = vpop.f32.mrb[0].mxu0
      %v626 = vadd.f32 0.0, %v625
      %v627 = vpop.f32.mrb[0].mxu0
      %628 = vdwg.mxu0
      %v630 = vlaneseq
      %v631 = vshrl.u32 %v630, 7
      %v632 = vsub.s32 0, %v631
      %v633 = vrot.slane %v510, %v632
      %v635 = vmul.f32 %v615, %v633
      %v636 = vmul.f32 %v618, %v633
      %v637 = vmul.f32 %v623, %v633
      %v638 = vmul.f32 %v626, %v633
      %v640 = vlaneseq
      %v641 = vshrl.u32 %v640, 7
      %v642 = vsub.s32 0, %v641
      %v643 = vrot.slane %v511, %v642
      %v645 = vadd.f32 %v635, %v643
      %v646 = vadd.f32 %v636, %v643
      %v647 = vadd.f32 %v637, %v643
      %v648 = vadd.f32 %v638, %v643
      %vm649 = vcmp.ge.f32.partialorder %v645, 0.0
      %vm650 = vcmp.ge.f32.partialorder %v646, 0.0
      %vm651 = vcmp.ge.f32.partialorder %v647, 0.0
      %vm652 = vcmp.ge.f32.partialorder %v648, 0.0
      %v653 = vmul.f32 %v645, 0.2
      %v654 = vmul.f32 %v646, 0.2
      %v655 = vmul.f32 %v647, 0.2
      %v656 = vmul.f32 %v648, 0.2
      %v657 = vsel %vm649, %v645, %v653
      %v658 = vsel %vm650, %v646, %v654
      %v659 = vsel %vm651, %v647, %v655
      %v660 = vsel %vm652, %v648, %v656
      %v661 = vpack.c.bf16 %v658, %v657
      %v662 = vpack.c.bf16 %v660, %v659
      %v663 = vld [vmem:[%s5] sm:$0xf]
      %v664 = vld [vmem:[%s5 + $0x4] sm:$0xf]
      %v665 = vld [vmem:[%s5 + $0x8] sm:$0xf]
      %v666 = vld [vmem:[%s5 + $0xc] sm:$0xf]
      %v667 = vld [vmem:[%s5 + $0x10] sm:$0xf]
      %v668 = vld [vmem:[%s5 + $0x14] sm:$0xf]
      %v669 = vld [vmem:[%s5 + $0x18] sm:$0xf]
      %v670 = vld [vmem:[%s5 + $0x1c] sm:$0xf]
      %v679 = vunpack.c.l.b16 %v663
      %v680 = vunpack.c.l.b16 %v664
      %v681 = vunpack.c.l.b16 %v665
      %v682 = vunpack.c.l.b16 %v666
      %v683 = vunpack.c.l.b16 %v667
      %v684 = vunpack.c.l.b16 %v668
      %v685 = vunpack.c.l.b16 %v669
      %v686 = vunpack.c.l.b16 %v670
      %v687 = vpack.c.b16 %v680, %v679
      %v688 = vpack.c.b16 %v682, %v681
      %v689 = vpack.c.b16 %v684, %v683
      %v690 = vpack.c.b16 %v686, %v685
      %vm695 = vcmask 523264
      %v697 = vsel %vm695, %v661, 0
      %v700 = vsel %vm695, %v662, 0
      %702 = vmatprep.subr.bf16.mxu0 0
      %703 = vmatpush1.bf16.msra.mxu0 %v687
      %704 = vmatprep.subr.bf16.mxu0 0
      %705 = vmatpush1.bf16.msra.mxu0 %v688
      %706 = vmatprep.subr.bf16.mxu0 0
      %707 = vmatpush1.bf16.msra.mxu0 %v689
      %708 = vmatprep.subr.bf16.mxu0 0
      %709 = vmatpush1.bf16.msra.mxu0 %v690
      %710 = vmatprep.subr.bf16.mxu0 0
      %711 = vmatpush1.bf16.msra.mxu0 0
      %712 = vmatprep.subr.bf16.mxu0 0
      %713 = vmatpush1.bf16.msra.mxu0 0
      %714 = vmatprep.subr.bf16.mxu0 0
      %715 = vmatpush1.bf16.msra.mxu0 0
      %716 = vmatprep.subr.bf16.mxu0 0
      %717 = vmatpush1.bf16.msra.mxu0 0
      %718 = vmatprep.subr.bf16.mxu0 0
      %719 = vmatpush1.bf16.msra.mxu0 0
      %720 = vmatprep.subr.bf16.mxu0 0
      %721 = vmatpush1.bf16.msra.mxu0 0
      %722 = vmatprep.subr.bf16.mxu0 0
      %723 = vmatpush1.bf16.msra.mxu0 0
      %724 = vmatprep.subr.bf16.mxu0 0
      %725 = vmatpush1.bf16.msra.mxu0 0
      %726 = vmatprep.subr.bf16.mxu0 0
      %727 = vmatpush1.bf16.msra.mxu0 0
      %728 = vmatprep.subr.bf16.mxu0 0
      %729 = vmatpush1.bf16.msra.mxu0 0
      %730 = vmatprep.subr.bf16.mxu0 0
      %731 = vmatpush1.bf16.msra.mxu0 0
      %732 = vmatprep.subr.bf16.mxu0 0
      %733 = vmatpush1.bf16.msra.mxu0 0
      %734 = vmatprep.mubr.bf16.mxu0 0
      %735 = vmatmul.mubr.bf16.gmra.mrb[0].mxu0 %v697
      %v736 = vpop.f32.mrb[0].mxu0
      %v737 = vadd.f32 0.0, %v736
      %v738 = vpop.f32.mrb[0].mxu0
      %v739 = vpop.f32.mrb[0].mxu0
      %v740 = vadd.f32 0.0, %v739
      %v741 = vpop.f32.mrb[0].mxu0
      %742 = vmatprep.mubr.bf16.mxu0 0
      %743 = vmatmul.mubr.bf16.gmra.mrb[0].mxu0 %v700
      %v744 = vpop.f32.mrb[0].mxu0
      %v745 = vadd.f32 0.0, %v744
      %v746 = vpop.f32.mrb[0].mxu0
      %v747 = vpop.f32.mrb[0].mxu0
      %v748 = vadd.f32 0.0, %v747
      %v749 = vpop.f32.mrb[0].mxu0
      %750 = vdwg.mxu0
      %v752 = vlaneseq
      %v753 = vshrl.u32 %v752, 7
      %v754 = vsub.s32 0, %v753
      %v755 = vrot.slane %v512, %v754
      %v757 = vmul.f32 %v737, %v755
      %v758 = vmul.f32 %v740, %v755
      %v759 = vmul.f32 %v745, %v755
      %v760 = vmul.f32 %v748, %v755
      %v762 = vlaneseq
      %v763 = vshrl.u32 %v762, 7
      %v764 = vsub.s32 0, %v763
      %v765 = vrot.slane %v513, %v764
      %v767 = vadd.f32 %v757, %v765
      %v768 = vadd.f32 %v758, %v765
      %v769 = vadd.f32 %v759, %v765
      %v770 = vadd.f32 %v760, %v765
      %vm771 = vcmp.ge.f32.partialorder %v767, 0.0
      %vm772 = vcmp.ge.f32.partialorder %v768, 0.0
      %vm773 = vcmp.ge.f32.partialorder %v769, 0.0
      %vm774 = vcmp.ge.f32.partialorder %v770, 0.0
      %v775 = vmul.f32 %v767, 0.2
      %v776 = vmul.f32 %v768, 0.2
      %v777 = vmul.f32 %v769, 0.2
      %v778 = vmul.f32 %v770, 0.2
      %v779 = vsel %vm771, %v767, %v775
      %v780 = vsel %vm772, %v768, %v776
      %v781 = vsel %vm773, %v769, %v777
      %v782 = vsel %vm774, %v770, %v778
      %v783 = vpack.c.bf16 %v780, %v779
      %v784 = vpack.c.bf16 %v782, %v781
      %v785 = vld [vmem:[%s8] sm:$0xff]
      %v786 = vld [vmem:[%s8 + $0x8] sm:$0xff]
      %v787 = vld [vmem:[%s8 + $0x10] sm:$0xff]
      %v788 = vld [vmem:[%s8 + $0x18] sm:$0xff]
      %v789 = vld [vmem:[%s8 + $0x20] sm:$0xff]
      %v790 = vld [vmem:[%s8 + $0x28] sm:$0xff]
      %v791 = vld [vmem:[%s8 + $0x30] sm:$0xff]
      %v792 = vld [vmem:[%s8 + $0x38] sm:$0xff]
      %v793 = vld [vmem:[%s8 + $0x40] sm:$0xff]
      %v794 = vld [vmem:[%s8 + $0x48] sm:$0xff]
      %v795 = vld [vmem:[%s8 + $0x50] sm:$0xff]
      %v796 = vld [vmem:[%s8 + $0x58] sm:$0xff]
      %v797 = vld [vmem:[%s8 + $0x60] sm:$0xff]
      %v798 = vld [vmem:[%s8 + $0x68] sm:$0xff]
      %v799 = vld [vmem:[%s8 + $0x70] sm:$0xff]
      %v800 = vld [vmem:[%s8 + $0x78] sm:$0xff]
      %v817 = vunpack.c.l.b16 %v785
      %v818 = vunpack.c.h.b16 %v785
      %v819 = vunpack.c.l.b16 %v786
      %v820 = vunpack.c.h.b16 %v786
      %v821 = vunpack.c.l.b16 %v787
      %v822 = vunpack.c.h.b16 %v787
      %v823 = vunpack.c.l.b16 %v788
      %v824 = vunpack.c.h.b16 %v788
      %v825 = vunpack.c.l.b16 %v789
      %v826 = vunpack.c.h.b16 %v789
      %v827 = vunpack.c.l.b16 %v790
      %v828 = vunpack.c.h.b16 %v790
      %v829 = vunpack.c.l.b16 %v791
      %v830 = vunpack.c.h.b16 %v791
      %v831 = vunpack.c.l.b16 %v792
      %v832 = vunpack.c.h.b16 %v792
      %v833 = vunpack.c.l.b16 %v793
      %v834 = vunpack.c.h.b16 %v793
      %v835 = vunpack.c.l.b16 %v794
      %v836 = vunpack.c.h.b16 %v794
      %v837 = vunpack.c.l.b16 %v795
      %v838 = vunpack.c.h.b16 %v795
      %v839 = vunpack.c.l.b16 %v796
      %v840 = vunpack.c.h.b16 %v796
      %v841 = vunpack.c.l.b16 %v797
      %v842 = vunpack.c.h.b16 %v797
      %v843 = vunpack.c.l.b16 %v798
      %v844 = vunpack.c.h.b16 %v798
      %v845 = vunpack.c.l.b16 %v799
      %v846 = vunpack.c.h.b16 %v799
      %v847 = vunpack.c.l.b16 %v800
      %v848 = vunpack.c.h.b16 %v800
      %v849 = vpack.c.b16 %v819, %v817
      %v850 = vpack.c.b16 %v820, %v818
      %v851 = vpack.c.b16 %v823, %v821
      %v852 = vpack.c.b16 %v824, %v822
      %v853 = vpack.c.b16 %v827, %v825
      %v854 = vpack.c.b16 %v828, %v826
      %v855 = vpack.c.b16 %v831, %v829
      %v856 = vpack.c.b16 %v832, %v830
      %v857 = vpack.c.b16 %v835, %v833
      %v858 = vpack.c.b16 %v836, %v834
      %v859 = vpack.c.b16 %v839, %v837
      %v860 = vpack.c.b16 %v840, %v838
      %v861 = vpack.c.b16 %v843, %v841
      %v862 = vpack.c.b16 %v844, %v842
      %v863 = vpack.c.b16 %v847, %v845
      %v864 = vpack.c.b16 %v848, %v846
      %881 = vmatprep.subr.bf16.mxu0 %v850
      %882 = vmatpush1.bf16.msra.mxu0 %v849
      %883 = vmatprep.subr.bf16.mxu0 %v852
      %884 = vmatpush1.bf16.msra.mxu0 %v851
      %885 = vmatprep.subr.bf16.mxu0 %v854
      %886 = vmatpush1.bf16.msra.mxu0 %v853
      %887 = vmatprep.subr.bf16.mxu0 %v856
      %888 = vmatpush1.bf16.msra.mxu0 %v855
      %889 = vmatprep.subr.bf16.mxu0 %v858
      %890 = vmatpush1.bf16.msra.mxu0 %v857
      %891 = vmatprep.subr.bf16.mxu0 %v860
      %892 = vmatpush1.bf16.msra.mxu0 %v859
      %893 = vmatprep.subr.bf16.mxu0 %v862
      %894 = vmatpush1.bf16.msra.mxu0 %v861
      %895 = vmatprep.subr.bf16.mxu0 %v864
      %896 = vmatpush1.bf16.msra.mxu0 %v863
      %897 = vmatprep.subr.bf16.mxu0 0
      %898 = vmatpush1.bf16.msra.mxu0 0
      %899 = vmatprep.subr.bf16.mxu0 0
      %900 = vmatpush1.bf16.msra.mxu0 0
      %901 = vmatprep.subr.bf16.mxu0 0
      %902 = vmatpush1.bf16.msra.mxu0 0
      %903 = vmatprep.subr.bf16.mxu0 0
      %904 = vmatpush1.bf16.msra.mxu0 0
      %905 = vmatprep.subr.bf16.mxu0 0
      %906 = vmatpush1.bf16.msra.mxu0 0
      %907 = vmatprep.subr.bf16.mxu0 0
      %908 = vmatpush1.bf16.msra.mxu0 0
      %909 = vmatprep.subr.bf16.mxu0 0
      %910 = vmatpush1.bf16.msra.mxu0 0
      %911 = vmatprep.subr.bf16.mxu0 0
      %912 = vmatpush1.bf16.msra.mxu0 0
      %913 = vmatprep.mubr.bf16.mxu0 0
      %914 = vmatmul.mubr.bf16.gmra.mrb[0].mxu0 %v783
      %v915 = vpop.f32.mrb[0].mxu0
      %v916 = vadd.f32 0.0, %v915
      %v917 = vpop.f32.mrb[0].mxu0
      %v918 = vadd.f32 0.0, %v917
      %v919 = vpop.f32.mrb[0].mxu0
      %v920 = vadd.f32 0.0, %v919
      %v921 = vpop.f32.mrb[0].mxu0
      %v922 = vadd.f32 0.0, %v921
      %923 = vmatprep.mubr.bf16.mxu0 0
      %924 = vmatmul.mubr.bf16.gmra.mrb[0].mxu0 %v784
      %v925 = vpop.f32.mrb[0].mxu0
      %v926 = vadd.f32 0.0, %v925
      %v927 = vpop.f32.mrb[0].mxu0
      %v928 = vadd.f32 0.0, %v927
      %v929 = vpop.f32.mrb[0].mxu0
      %v930 = vadd.f32 0.0, %v929
      %v931 = vpop.f32.mrb[0].mxu0
      %v932 = vadd.f32 0.0, %v931
      %933 = vdwg.mxu0
      %v935 = vlaneseq
      %v936 = vshrl.u32 %v935, 7
      %v937 = vsub.s32 0, %v936
      %v938 = vrot.slane %v514, %v937
      %v939 = vlaneseq
      %v940 = vshrl.u32 %v939, 7
      %v941 = vsub.s32 1, %v940
      %v942 = vrot.slane %v514, %v941
      %v945 = vmul.f32 %v916, %v938
      %v946 = vmul.f32 %v918, %v942
      %v947 = vmul.f32 %v920, %v938
      %v948 = vmul.f32 %v922, %v942
      %v949 = vmul.f32 %v926, %v938
      %v950 = vmul.f32 %v928, %v942
      %v951 = vmul.f32 %v930, %v938
      %v952 = vmul.f32 %v932, %v942
      %v954 = vlaneseq
      %v955 = vshrl.u32 %v954, 7
      %v956 = vsub.s32 0, %v955
      %v957 = vrot.slane %v515, %v956
      %v958 = vlaneseq
      %v959 = vshrl.u32 %v958, 7
      %v960 = vsub.s32 1, %v959
      %v961 = vrot.slane %v515, %v960
      %v964 = vadd.f32 %v945, %v957
      %v965 = vadd.f32 %v946, %v961
      %v966 = vadd.f32 %v947, %v957
      %v967 = vadd.f32 %v948, %v961
      %v968 = vadd.f32 %v949, %v957
      %v969 = vadd.f32 %v950, %v961
      %v970 = vadd.f32 %v951, %v957
      %v971 = vadd.f32 %v952, %v961
      %vm972 = vcmp.ge.f32.partialorder %v964, 0.0
      %vm973 = vcmp.ge.f32.partialorder %v965, 0.0
      %vm974 = vcmp.ge.f32.partialorder %v966, 0.0
      %vm975 = vcmp.ge.f32.partialorder %v967, 0.0
      %vm976 = vcmp.ge.f32.partialorder %v968, 0.0
      %vm977 = vcmp.ge.f32.partialorder %v969, 0.0
      %vm978 = vcmp.ge.f32.partialorder %v970, 0.0
      %vm979 = vcmp.ge.f32.partialorder %v971, 0.0
      %v980 = vmul.f32 %v964, 0.2
      %v981 = vmul.f32 %v965, 0.2
      %v982 = vmul.f32 %v966, 0.2
      %v983 = vmul.f32 %v967, 0.2
      %v984 = vmul.f32 %v968, 0.2
      %v985 = vmul.f32 %v969, 0.2
      %v986 = vmul.f32 %v970, 0.2
      %v987 = vmul.f32 %v971, 0.2
      %v988 = vsel %vm972, %v964, %v980
      %v989 = vsel %vm973, %v965, %v981
      %v990 = vsel %vm974, %v966, %v982
      %v991 = vsel %vm975, %v967, %v983
      %v992 = vsel %vm976, %v968, %v984
      %v993 = vsel %vm977, %v969, %v985
      %v994 = vsel %vm978, %v970, %v986
      %v995 = vsel %vm979, %v971, %v987
      %v996 = vpack.c.bf16 %v990, %v988
      %v997 = vpack.c.bf16 %v991, %v989
      %v998 = vpack.c.bf16 %v994, %v992
      %v999 = vpack.c.bf16 %v995, %v993
      %v1000 = vld [vmem:[%s11] sm:$0xf]
      %v1001 = vld [vmem:[%s11 + $0x4] sm:$0xf]
      %v1002 = vld [vmem:[%s11 + $0x8] sm:$0xf]
      %v1003 = vld [vmem:[%s11 + $0xc] sm:$0xf]
      %v1004 = vld [vmem:[%s11 + $0x10] sm:$0xf]
      %v1005 = vld [vmem:[%s11 + $0x14] sm:$0xf]
      %v1006 = vld [vmem:[%s11 + $0x18] sm:$0xf]
      %v1007 = vld [vmem:[%s11 + $0x1c] sm:$0xf]
      %v1008 = vld [vmem:[%s11 + $0x20] sm:$0xf]
      %v1009 = vld [vmem:[%s11 + $0x24] sm:$0xf]
      %v1010 = vld [vmem:[%s11 + $0x28] sm:$0xf]
      %v1011 = vld [vmem:[%s11 + $0x2c] sm:$0xf]
      %v1012 = vld [vmem:[%s11 + $0x30] sm:$0xf]
      %v1013 = vld [vmem:[%s11 + $0x34] sm:$0xf]
      %v1014 = vld [vmem:[%s11 + $0x38] sm:$0xf]
      %v1015 = vld [vmem:[%s11 + $0x3c] sm:$0xf]
      %v1016 = vld [vmem:[%s11 + $0x40] sm:$0xf]
      %v1017 = vld [vmem:[%s11 + $0x44] sm:$0xf]
      %v1018 = vld [vmem:[%s11 + $0x48] sm:$0xf]
      %v1019 = vld [vmem:[%s11 + $0x4c] sm:$0xf]
      %v1020 = vld [vmem:[%s11 + $0x50] sm:$0xf]
      %v1021 = vld [vmem:[%s11 + $0x54] sm:$0xf]
      %v1022 = vld [vmem:[%s11 + $0x58] sm:$0xf]
      %v1023 = vld [vmem:[%s11 + $0x5c] sm:$0xf]
      %v1024 = vld [vmem:[%s11 + $0x60] sm:$0xf]
      %v1025 = vld [vmem:[%s11 + $0x64] sm:$0xf]
      %v1026 = vld [vmem:[%s11 + $0x68] sm:$0xf]
      %v1027 = vld [vmem:[%s11 + $0x6c] sm:$0xf]
      %v1028 = vld [vmem:[%s11 + $0x70] sm:$0xf]
      %v1029 = vld [vmem:[%s11 + $0x74] sm:$0xf]
      %v1030 = vld [vmem:[%s11 + $0x78] sm:$0xf]
      %v1031 = vld [vmem:[%s11 + $0x7c] sm:$0xf]
      %v1032 = vld [vmem:[%s12] sm:$0xf]
      %v1033 = vld [vmem:[%s12 + $0x4] sm:$0xf]
      %v1034 = vld [vmem:[%s12 + $0x8] sm:$0xf]
      %v1035 = vld [vmem:[%s12 + $0xc] sm:$0xf]
      %v1036 = vld [vmem:[%s12 + $0x10] sm:$0xf]
      %v1037 = vld [vmem:[%s12 + $0x14] sm:$0xf]
      %v1038 = vld [vmem:[%s12 + $0x18] sm:$0xf]
      %v1039 = vld [vmem:[%s12 + $0x1c] sm:$0xf]
      %v1040 = vld [vmem:[%s12 + $0x20] sm:$0xf]
      %v1041 = vld [vmem:[%s12 + $0x24] sm:$0xf]
      %v1042 = vld [vmem:[%s12 + $0x28] sm:$0xf]
      %v1043 = vld [vmem:[%s12 + $0x2c] sm:$0xf]
      %v1044 = vld [vmem:[%s12 + $0x30] sm:$0xf]
      %v1045 = vld [vmem:[%s12 + $0x34] sm:$0xf]
      %v1046 = vld [vmem:[%s12 + $0x38] sm:$0xf]
      %v1047 = vld [vmem:[%s12 + $0x3c] sm:$0xf]
      %v1048 = vld [vmem:[%s12 + $0x40] sm:$0xf]
      %v1049 = vld [vmem:[%s12 + $0x44] sm:$0xf]
      %v1050 = vld [vmem:[%s12 + $0x48] sm:$0xf]
      %v1051 = vld [vmem:[%s12 + $0x4c] sm:$0xf]
      %v1052 = vld [vmem:[%s12 + $0x50] sm:$0xf]
      %v1053 = vld [vmem:[%s12 + $0x54] sm:$0xf]
      %v1054 = vld [vmem:[%s12 + $0x58] sm:$0xf]
      %v1055 = vld [vmem:[%s12 + $0x5c] sm:$0xf]
      %v1056 = vld [vmem:[%s12 + $0x60] sm:$0xf]
      %v1057 = vld [vmem:[%s12 + $0x64] sm:$0xf]
      %v1058 = vld [vmem:[%s12 + $0x68] sm:$0xf]
      %v1059 = vld [vmem:[%s12 + $0x6c] sm:$0xf]
      %v1060 = vld [vmem:[%s12 + $0x70] sm:$0xf]
      %v1061 = vld [vmem:[%s12 + $0x74] sm:$0xf]
      %v1062 = vld [vmem:[%s12 + $0x78] sm:$0xf]
      %v1063 = vld [vmem:[%s12 + $0x7c] sm:$0xf]
      %v1096 = vunpack.c.l.b16 %v1032
      %v1097 = vunpack.c.l.b16 %v1033
      %v1098 = vunpack.c.l.b16 %v1034
      %v1099 = vunpack.c.l.b16 %v1035
      %v1100 = vunpack.c.l.b16 %v1036
      %v1101 = vunpack.c.l.b16 %v1037
      %v1102 = vunpack.c.l.b16 %v1038
      %v1103 = vunpack.c.l.b16 %v1039
      %v1104 = vunpack.c.l.b16 %v1040
      %v1105 = vunpack.c.l.b16 %v1041
      %v1106 = vunpack.c.l.b16 %v1042
      %v1107 = vunpack.c.l.b16 %v1043
      %v1108 = vunpack.c.l.b16 %v1044
      %v1109 = vunpack.c.l.b16 %v1045
      %v1110 = vunpack.c.l.b16 %v1046
      %v1111 = vunpack.c.l.b16 %v1047
      %v1112 = vunpack.c.l.b16 %v1048
      %v1113 = vunpack.c.l.b16 %v1049
      %v1114 = vunpack.c.l.b16 %v1050
      %v1115 = vunpack.c.l.b16 %v1051
      %v1116 = vunpack.c.l.b16 %v1052
      %v1117 = vunpack.c.l.b16 %v1053
      %v1118 = vunpack.c.l.b16 %v1054
      %v1119 = vunpack.c.l.b16 %v1055
      %v1120 = vunpack.c.l.b16 %v1056
      %v1121 = vunpack.c.l.b16 %v1057
      %v1122 = vunpack.c.l.b16 %v1058
      %v1123 = vunpack.c.l.b16 %v1059
      %v1124 = vunpack.c.l.b16 %v1060
      %v1125 = vunpack.c.l.b16 %v1061
      %v1126 = vunpack.c.l.b16 %v1062
      %v1127 = vunpack.c.l.b16 %v1063
      %v1128 = vpack.c.b16 %v1097, %v1096
      %v1129 = vpack.c.b16 %v1099, %v1098
      %v1130 = vpack.c.b16 %v1101, %v1100
      %v1131 = vpack.c.b16 %v1103, %v1102
      %v1132 = vpack.c.b16 %v1105, %v1104
      %v1133 = vpack.c.b16 %v1107, %v1106
      %v1134 = vpack.c.b16 %v1109, %v1108
      %v1135 = vpack.c.b16 %v1111, %v1110
      %v1136 = vpack.c.b16 %v1113, %v1112
      %v1137 = vpack.c.b16 %v1115, %v1114
      %v1138 = vpack.c.b16 %v1117, %v1116
      %v1139 = vpack.c.b16 %v1119, %v1118
      %v1140 = vpack.c.b16 %v1121, %v1120
      %v1141 = vpack.c.b16 %v1123, %v1122
      %v1142 = vpack.c.b16 %v1125, %v1124
      %v1143 = vpack.c.b16 %v1127, %v1126
      %1160 = vmatprep.subr.bf16.mxu0 0
      %1161 = vmatpush1.bf16.msra.mxu0 %v1128
      %1162 = vmatprep.subr.bf16.mxu0 0
      %1163 = vmatpush1.bf16.msra.mxu0 %v1129
      %1164 = vmatprep.subr.bf16.mxu0 0
      %1165 = vmatpush1.bf16.msra.mxu0 %v1130
      %1166 = vmatprep.subr.bf16.mxu0 0
      %1167 = vmatpush1.bf16.msra.mxu0 %v1131
      %1168 = vmatprep.subr.bf16.mxu0 0
      %1169 = vmatpush1.bf16.msra.mxu0 %v1132
      %1170 = vmatprep.subr.bf16.mxu0 0
      %1171 = vmatpush1.bf16.msra.mxu0 %v1133
      %1172 = vmatprep.subr.bf16.mxu0 0
      %1173 = vmatpush1.bf16.msra.mxu0 %v1134
      %1174 = vmatprep.subr.bf16.mxu0 0
      %1175 = vmatpush1.bf16.msra.mxu0 %v1135
      %1176 = vmatprep.subr.bf16.mxu0 0
      %1177 = vmatpush1.bf16.msra.mxu0 %v1136
      %1178 = vmatprep.subr.bf16.mxu0 0
      %1179 = vmatpush1.bf16.msra.mxu0 %v1137
      %1180 = vmatprep.subr.bf16.mxu0 0
      %1181 = vmatpush1.bf16.msra.mxu0 %v1138
      %1182 = vmatprep.subr.bf16.mxu0 0
      %1183 = vmatpush1.bf16.msra.mxu0 %v1139
      %1184 = vmatprep.subr.bf16.mxu0 0
      %1185 = vmatpush1.bf16.msra.mxu0 %v1140
      %1186 = vmatprep.subr.bf16.mxu0 0
      %1187 = vmatpush1.bf16.msra.mxu0 %v1141
      %1188 = vmatprep.subr.bf16.mxu0 0
      %1189 = vmatpush1.bf16.msra.mxu0 %v1142
      %1190 = vmatprep.subr.bf16.mxu0 0
      %1191 = vmatpush1.bf16.msra.mxu0 %v1143
      %1192 = vmatprep.mubr.bf16.mxu0 %v999
      %1193 = vmatmul.mubr.bf16.gmra.mrb[0].mxu0 %v998
      %v1194 = vpop.f32.mrb[0].mxu0
      %v1195 = vadd.f32 0.0, %v1194
      %v1196 = vpop.f32.mrb[0].mxu0
      %v1197 = vpop.f32.mrb[0].mxu0
      %v1198 = vadd.f32 0.0, %v1197
      %v1199 = vpop.f32.mrb[0].mxu0
      %1200 = vdwg.mxu0
      %v1233 = vunpack.c.l.b16 %v1000
      %v1234 = vunpack.c.l.b16 %v1001
      %v1235 = vunpack.c.l.b16 %v1002
      %v1236 = vunpack.c.l.b16 %v1003
      %v1237 = vunpack.c.l.b16 %v1004
      %v1238 = vunpack.c.l.b16 %v1005
      %v1239 = vunpack.c.l.b16 %v1006
      %v1240 = vunpack.c.l.b16 %v1007
      %v1241 = vunpack.c.l.b16 %v1008
      %v1242 = vunpack.c.l.b16 %v1009
      %v1243 = vunpack.c.l.b16 %v1010
      %v1244 = vunpack.c.l.b16 %v1011
      %v1245 = vunpack.c.l.b16 %v1012
      %v1246 = vunpack.c.l.b16 %v1013
      %v1247 = vunpack.c.l.b16 %v1014
      %v1248 = vunpack.c.l.b16 %v1015
      %v1249 = vunpack.c.l.b16 %v1016
      %v1250 = vunpack.c.l.b16 %v1017
      %v1251 = vunpack.c.l.b16 %v1018
      %v1252 = vunpack.c.l.b16 %v1019
      %v1253 = vunpack.c.l.b16 %v1020
      %v1254 = vunpack.c.l.b16 %v1021
      %v1255 = vunpack.c.l.b16 %v1022
      %v1256 = vunpack.c.l.b16 %v1023
      %v1257 = vunpack.c.l.b16 %v1024
      %v1258 = vunpack.c.l.b16 %v1025
      %v1259 = vunpack.c.l.b16 %v1026
      %v1260 = vunpack.c.l.b16 %v1027
      %v1261 = vunpack.c.l.b16 %v1028
      %v1262 = vunpack.c.l.b16 %v1029
      %v1263 = vunpack.c.l.b16 %v1030
      %v1264 = vunpack.c.l.b16 %v1031
      %v1265 = vpack.c.b16 %v1234, %v1233
      %v1266 = vpack.c.b16 %v1236, %v1235
      %v1267 = vpack.c.b16 %v1238, %v1237
      %v1268 = vpack.c.b16 %v1240, %v1239
      %v1269 = vpack.c.b16 %v1242, %v1241
      %v1270 = vpack.c.b16 %v1244, %v1243
      %v1271 = vpack.c.b16 %v1246, %v1245
      %v1272 = vpack.c.b16 %v1248, %v1247
      %v1273 = vpack.c.b16 %v1250, %v1249
      %v1274 = vpack.c.b16 %v1252, %v1251
      %v1275 = vpack.c.b16 %v1254, %v1253
      %v1276 = vpack.c.b16 %v1256, %v1255
      %v1277 = vpack.c.b16 %v1258, %v1257
      %v1278 = vpack.c.b16 %v1260, %v1259
      %v1279 = vpack.c.b16 %v1262, %v1261
      %v1280 = vpack.c.b16 %v1264, %v1263
      %1297 = vmatprep.subr.bf16.mxu0 0
      %1298 = vmatpush1.bf16.msra.mxu0 %v1265
      %1299 = vmatprep.subr.bf16.mxu0 0
      %1300 = vmatpush1.bf16.msra.mxu0 %v1266
      %1301 = vmatprep.subr.bf16.mxu0 0
      %1302 = vmatpush1.bf16.msra.mxu0 %v1267
      %1303 = vmatprep.subr.bf16.mxu0 0
      %1304 = vmatpush1.bf16.msra.mxu0 %v1268
      %1305 = vmatprep.subr.bf16.mxu0 0
      %1306 = vmatpush1.bf16.msra.mxu0 %v1269
      %1307 = vmatprep.subr.bf16.mxu0 0
      %1308 = vmatpush1.bf16.msra.mxu0 %v1270
      %1309 = vmatprep.subr.bf16.mxu0 0
      %1310 = vmatpush1.bf16.msra.mxu0 %v1271
      %1311 = vmatprep.subr.bf16.mxu0 0
      %1312 = vmatpush1.bf16.msra.mxu0 %v1272
      %1313 = vmatprep.subr.bf16.mxu0 0
      %1314 = vmatpush1.bf16.msra.mxu0 %v1273
      %1315 = vmatprep.subr.bf16.mxu0 0
      %1316 = vmatpush1.bf16.msra.mxu0 %v1274
      %1317 = vmatprep.subr.bf16.mxu0 0
      %1318 = vmatpush1.bf16.msra.mxu0 %v1275
      %1319 = vmatprep.subr.bf16.mxu0 0
      %1320 = vmatpush1.bf16.msra.mxu0 %v1276
      %1321 = vmatprep.subr.bf16.mxu0 0
      %1322 = vmatpush1.bf16.msra.mxu0 %v1277
      %1323 = vmatprep.subr.bf16.mxu0 0
      %1324 = vmatpush1.bf16.msra.mxu0 %v1278
      %1325 = vmatprep.subr.bf16.mxu0 0
      %1326 = vmatpush1.bf16.msra.mxu0 %v1279
      %1327 = vmatprep.subr.bf16.mxu0 0
      %1328 = vmatpush1.bf16.msra.mxu0 %v1280
      %1329 = vmatprep.mubr.bf16.mxu0 %v997
      %1330 = vmatmul.mubr.bf16.gmra.mrb[0].mxu0 %v996
      %v1331 = vpop.f32.mrb[0].mxu0
      %v1332 = vadd.f32 %v1195, %v1331
      %v1333 = vpop.f32.mrb[0].mxu0
      %v1334 = vpop.f32.mrb[0].mxu0
      %v1335 = vadd.f32 %v1198, %v1334
      %v1336 = vpop.f32.mrb[0].mxu0
      %1337 = vdwg.mxu0
      %v1338 = vld [vmem:[%s13] sm:$0x1]
      %v1340 = vlaneseq
      %v1341 = vshrl.u32 %v1340, 7
      %v1342 = vsub.s32 0, %v1341
      %v1343 = vrot.slane %v1338, %v1342
      %v1345 = vadd.f32 %v1332, %v1343
      %v1346 = vadd.f32 %v1335, %v1343
      %1347 = vst [vmem:[%s491] sm:$0xff] %v1345
      %1348 = vst [vmem:[%s491 + $0x8] sm:$0xff] %v1346
      %s1349 = smul.u32 2, %s25
      %p1350 = scmp.lt.s32.totalorder %s1349, 5
      %s1351 = scalar_select %p1350, %s1349, 5
      %s1352 = smul.addr %s1351, 8
      %s1353 = scalar_lea.vmem %s14, %s1352
      // Predicated region
      $region77: #{quadrantnet_forward.1} parent=75 // pred_check
        %p1354 = pneg %p347
      $region78: #{quadrantnet_forward.1} parent=75 // pred_check_branch
        %1356 = sbr.rel (%p1354) target = $region80
      $region79: #{quadrantnet_forward.1} parent=75 // pred_region
        %s1357 = smul.u32 2, %s25
      $region80: #{quadrantnet_forward.1} parent=75 // pred_fallthru
        _
    $region76: #{quadrantnet_forward.1} parent=5 // pred_fallthru
      _
    %p1358 = scmp.le.s32.totalorder 2, %s20
    // Predicated region
    $region81: #{quadrantnet_forward.1} parent=5 // pred_check
      %p1359 = pneg %p1358
    $region82: #{quadrantnet_forward.1} parent=5 // pred_check_branch
      %1361 = sbr.rel (%p1359) target = $region84
    $region83: #{quadrantnet_forward.1} parent=5 // pred_region
      %s1362 = ssub.s32 %s20, 2
      // Predicated region
      $region85: #{quadrantnet_forward.1} parent=83 // pred_check
        %p1363 = pneg %p353
      $region86: #{quadrantnet_forward.1} parent=83 // pred_check_branch
        %1365 = sbr.rel (%p1363) target = $region88
      $region87: #{quadrantnet_forward.1} parent=83 // pred_region
        %s1366 = smul.u32 2, %s26
        %p1367 = scmp.lt.s32.totalorder %s1366, 5
        %s1368 = scalar_select %p1367, %s1366, 5
        %s1369 = smul.addr %s1368, 8
        %s1370 = scalar_lea.vmem %s14, %s1369
      $region88: #{quadrantnet_forward.1} parent=83 // pred_fallthru
        _
    $region84: #{quadrantnet_forward.1} parent=5 // pred_fallthru
      _
  $region6: #{quadrantnet_forward.1} parent=0 // loop_footer
    %s24 = sadd.s32 1, %s20
  $region7: #{quadrantnet_forward.1} parent=0 // loop_footer_branch
    %19 = sbr.rel target = $region3
  $region8: #{quadrantnet_forward.1} parent=0 // loop_exit
    _

</llo_original>
